<compile_context>
chip_gen: v7x
topology: tpu7x:2x2x1
jax: 0.10.0
libtpu: 0.0.40
codegen_flags: <defaults>
</compile_context>

<pallas_src>
import functools

import jax
import jax.numpy as jnp
from jax.experimental import pallas as pl
from jax.experimental.pallas import tpu as pltpu

LN_EPS = 1e-5
LANES = 128


# ----------------------------- kernel --------------------------------------- #

def _ln_normalize(h, eps=LN_EPS):
    # One-pass stats: mean and E[x^2] are independent reductions (overlap on XLU).
    mean = jnp.mean(h, axis=-1, keepdims=True)
    msq = jnp.mean(h * h, axis=-1, keepdims=True)
    var = jnp.maximum(msq - mean * mean, 0.0)
    return (h - mean) * jax.lax.rsqrt(var + eps)


def _layernorm(h, gamma, beta):
    return _ln_normalize(h) * gamma + beta


def fused_classifier_kernel(x_ref,
                            wattn_ref, battn_ref,
                            g1_ref, be1_ref,
                            w1_ref, b1_ref, w2_ref, b2_ref,
                            g2_ref, be2_ref,
                            fcw_ref, fcb_ref,
                            out_ref,
                            *, fuse_ff_residual):
    h = x_ref[...].astype(jnp.float32)
    num_layers = wattn_ref.shape[0]

    # Static unroll over the encoder layers; activation never leaves VMEM/vregs.
    for l in range(num_layers):
        # --- self-attention block, residual pre-folded: W_attn = Wv@Wo + I ---
        z = jnp.dot(h.astype(wattn_ref.dtype), wattn_ref[l],
                    preferred_element_type=jnp.float32) + battn_ref[l]
        h = _layernorm(z, g1_ref[l], be1_ref[l])                 # post-norm 1

        # --- feed-forward: linear -> ReLU -> linear (+ residual) ---
        ff = jnp.dot(h.astype(w1_ref.dtype), w1_ref[l],
                     preferred_element_type=jnp.float32) + b1_ref[l]
        ff = jnp.maximum(ff, 0.0)
        if fuse_ff_residual:
            # v6e/v7x: residual folded into a single K=E+F matmul against
            # vstack([I, W2]); fills the 256-deep systolic column.
            cat = jnp.concatenate(
                [h.astype(w2_ref.dtype), ff.astype(w2_ref.dtype)], axis=-1)
            z2 = jnp.dot(cat, w2_ref[l],
                         preferred_element_type=jnp.float32) + b2_ref[l]
        else:
            # v5e path: K=128 matmul, residual add kept in exact f32.
            z2 = h + jnp.dot(ff.astype(w2_ref.dtype), w2_ref[l],
                             preferred_element_type=jnp.float32) + b2_ref[l]

        if l == num_layers - 1:
            # Last LN2 affine is folded into the classifier head weights.
            h = _ln_normalize(z2)
        else:
            h = _layernorm(z2, g2_ref[l], be2_ref[l])            # post-norm 2

    # --- classifier head, lane-dense (padded to a multiple of 128 classes) ---
    logits = jnp.dot(h.astype(fcw_ref.dtype), fcw_ref[...],
                     preferred_element_type=jnp.float32) + fcb_ref[...]
    out_ref[...] = logits.astype(out_ref.dtype)


# ----------------------------- wrapper --------------------------------------- #

def _full_spec(a):
    nd = a.ndim
    return pl.BlockSpec(a.shape, lambda i, _nd=nd: (0,) * _nd)


def medium_classifier(x, params, *, num_classes):
    # x is [N_tokens, E]; the PyTorch module runs it as a length-1 sequence, so
    # the attention-to-single-matmul reduction used here is exact.
    n, e = x.shape
    f = params["w1"].shape[2]
    c_pad = params["fc_w"].shape[1]
    # Static inference of which FF form the params were prepared for.
    fuse_ff = params["w2"].shape[1] == e + f

    kernel = functools.partial(fused_classifier_kernel, fuse_ff_residual=fuse_ff)

    args = (x,
            params["w_attn"], params["b_attn"],
            params["g1"], params["be1"],
            params["w1"], params["b1"], params["w2"], params["b2"],
            params["g2"], params["be2"],
            params["fc_w"], params["fc_b"])
    out_padded = pl.pallas_call(
        kernel,
        out_shape=jax.ShapeDtypeStruct((n, c_pad), jnp.float32),
        grid=(1,),
        in_specs=[_full_spec(a) for a in args],
        out_specs=pl.BlockSpec((n, c_pad), lambda i: (0, 0)),
        compiler_params=pltpu.CompilerParams(
            dimension_semantics=("arbitrary",)),
    )(*args)
    return out_padded[:, :num_classes]


# ----------------------------- params --------------------------------------- #

def init_raw_params(key, input_dim, ff_dim, num_layers, num_classes):
    """Raw, f32, per-layer parameters mirroring nn.TransformerEncoderLayer (eval)."""
    layers = []
    for _ in range(num_layers):
        keys = jax.random.split(key, 5)
        key = keys[0]
        layers.append(dict(
            wv=jax.random.normal(keys[1], (input_dim, input_dim), jnp.float32) * 0.02,
            bv=jnp.zeros((1, input_dim), jnp.float32),
            wo=jax.random.normal(keys[2], (input_dim, input_dim), jnp.float32) * 0.02,
            bo=jnp.zeros((1, input_dim), jnp.float32),
            g1=jnp.ones((1, input_dim), jnp.float32),
            be1=jnp.zeros((1, input_dim), jnp.float32),
            w1=jax.random.normal(keys[3], (input_dim, ff_dim), jnp.float32) * 0.02,
            b1=jnp.zeros((1, ff_dim), jnp.float32),
            w2=jax.random.normal(keys[4], (ff_dim, input_dim), jnp.float32) * 0.02,
            b2=jnp.zeros((1, input_dim), jnp.float32),
            g2=jnp.ones((1, input_dim), jnp.float32),
            be2=jnp.zeros((1, input_dim), jnp.float32),
        ))
    kfc, key = jax.random.split(key)
    return dict(
        layers=layers,
        fc_w=jax.random.normal(kfc, (input_dim, num_classes), jnp.float32) * 0.02,
        fc_b=jnp.zeros((1, num_classes), jnp.float32),
    )


def prepare_params(raw, *, fuse_ff_residual=True):
    """Fold residuals/affines into weights, stack layers [L,...], bf16 MXU weights."""
    layers = raw["layers"]
    e = raw["fc_w"].shape[0]
    eye = jnp.eye(e, dtype=jnp.float32)

    def stack(fn):
        return jnp.stack([fn(p) for p in layers], axis=0)

    # Attention: fold Wv@Wo and the skip connection (identity) into one weight.
    w_attn = stack(lambda p: (p["wv"] @ p["wo"] + eye).astype(jnp.bfloat16))  # (L,E,E)
    b_attn = stack(lambda p: p["bv"] @ p["wo"] + p["bo"])                     # (L,1,E) f32

    # Feed-forward second matmul: optionally fold the residual as vstack([I, W2]).
    if fuse_ff_residual:
        w2 = stack(lambda p: jnp.concatenate([eye, p["w2"]], axis=0)
                   .astype(jnp.bfloat16))                                     # (L,E+F,E)
    else:
        w2 = stack(lambda p: p["w2"].astype(jnp.bfloat16))                    # (L,F,E)

    # Classifier head: fold last layer's LN2 affine and fc bias into the head.
    g2_last = layers[-1]["g2"]     # (1, E)
    be2_last = layers[-1]["be2"]   # (1, E)
    fc_w_folded = raw["fc_w"] * g2_last.T          # diag(g2_L) @ fc_w
    fc_b_folded = raw["fc_b"] + be2_last @ raw["fc_w"]

    c = raw["fc_w"].shape[1]
    c_pad = ((c + LANES - 1) // LANES) * LANES
    fc_w = (jnp.zeros((e, c_pad), jnp.float32)
            .at[:, :c].set(fc_w_folded).astype(jnp.bfloat16))
    fc_b = jnp.zeros((1, c_pad), jnp.float32).at[:, :c].set(fc_b_folded)

    return dict(
        w_attn=w_attn, b_attn=b_attn,
        g1=stack(lambda p: p["g1"]), be1=stack(lambda p: p["be1"]),
        w1=stack(lambda p: p["w1"].astype(jnp.bfloat16)), b1=stack(lambda p: p["b1"]),
        w2=w2, b2=stack(lambda p: p["b2"]),
        g2=stack(lambda p: p["g2"]), be2=stack(lambda p: p["be2"]),
        fc_w=fc_w, fc_b=fc_b,
    )


def _use_ff_residual_fusion():
    """Enable the K=E+F FF fusion only on chips with a 256-deep MXU (v6e/v7x)."""
    try:
        kind = jax.devices()[0].device_kind.lower()
    except Exception:
        return False
    return ("v6" in kind) or ("v7" in kind) or ("7x" in kind)


# ----------------------------- reference ------------------------------------- #

def _ref_layernorm(h, gamma, beta, eps=LN_EPS):
    mean = jnp.mean(h, axis=-1, keepdims=True)
    var = jnp.mean(jnp.square(h - mean), axis=-1, keepdims=True)
    return (h - mean) * jax.lax.rsqrt(var + eps) * gamma + beta


def reference_forward(x, raw):
    """Pure-JAX f32 reference (unfolded, unfused) of the PyTorch eval forward."""
    h = x
    for p in raw["layers"]:
        v = h @ p["wv"] + p["bv"]
        attn = v @ p["wo"] + p["bo"]
        h = _ref_layernorm(h + attn, p["g1"], p["be1"])
        ff = jnp.maximum(h @ p["w1"] + p["b1"], 0.0)
        ff = ff @ p["w2"] + p["b2"]
        h = _ref_layernorm(h + ff, p["g2"], p["be2"])
    return h @ raw["fc_w"] + raw["fc_b"]


# ----------------------------- main ------------------------------------------ #

if __name__ == "__main__":
    # Small, lane-aligned shapes consistent with the module's forward:
    # d_model=128 (divisible by num_heads=4), dim_feedforward=d_model (as in
    # MediumClassifier where hidden_dim == input_dim), num_layers=4,
    # num_classes=10, 8 tokens.
    # NOTE: at N=8 the kernel is latency-bound; batch tokens to N >= 128/256
    # per call in real deployments before further tuning.
    INPUT_DIM, FF_DIM, NUM_LAYERS, NUM_CLASSES, N_TOKENS = 128, 128, 4, 10, 8

    key = jax.random.PRNGKey(0)
    kx, kp = jax.random.split(key)
    x = jax.random.normal(kx, (N_TOKENS, INPUT_DIM), jnp.float32)

    raw = init_raw_params(kp, INPUT_DIM, FF_DIM, NUM_LAYERS, NUM_CLASSES)
    params = prepare_params(raw, fuse_ff_residual=_use_ff_residual_fusion())

    forward = jax.jit(functools.partial(medium_classifier, num_classes=NUM_CLASSES))
    out = forward(x, params)
    jax.block_until_ready(out)
    assert out.shape == (N_TOKENS, NUM_CLASSES)

    # Loose tolerance covers the intentional bf16 weight casts, the Wv@Wo+I and
    # FF-residual folds (residual path passes through bf16), and the head folds.
    ref = reference_forward(x, raw)
    max_err = float(jnp.max(jnp.abs(out - ref)))
    assert max_err < 5e-2, f"mismatch vs f32 reference: {max_err}"

    print("KERNEL_OK")
</pallas_src>

<mosaic_0001>
module attributes {stable_mosaic.version = 11 : i64} {
  func.func @fused_classifier_kernel(%arg0: i32, %arg1: memref<8x128xf32, #tpu.memory_space<vmem>>, %arg2: memref<4x128x128xbf16, #tpu.memory_space<vmem>>, %arg3: memref<4x1x128xf32, #tpu.memory_space<vmem>>, %arg4: memref<4x1x128xf32, #tpu.memory_space<vmem>>, %arg5: memref<4x1x128xf32, #tpu.memory_space<vmem>>, %arg6: memref<4x128x128xbf16, #tpu.memory_space<vmem>>, %arg7: memref<4x1x128xf32, #tpu.memory_space<vmem>>, %arg8: memref<4x128x128xbf16, #tpu.memory_space<vmem>>, %arg9: memref<4x1x128xf32, #tpu.memory_space<vmem>>, %arg10: memref<4x1x128xf32, #tpu.memory_space<vmem>>, %arg11: memref<4x1x128xf32, #tpu.memory_space<vmem>>, %arg12: memref<128x128xbf16, #tpu.memory_space<vmem>>, %arg13: memref<1x128xf32, #tpu.memory_space<vmem>>, %arg14: memref<8x128xf32, #tpu.memory_space<vmem>>) attributes {dimension_semantics = [#tpu.dimension_semantics<arbitrary>], iteration_bounds = array<i64: 1>, scalar_prefetch = 0 : i64, scratch_operands = 0 : i64, tpu.core_type = #tpu.core_type<tc>, window_params = [{pipeline_mode = #tpu.pipeline_mode<synchronous>, transform_indices = @transform_0, window_bounds = array<i64: 8, 128>}, {pipeline_mode = #tpu.pipeline_mode<synchronous>, transform_indices = @transform_1, window_bounds = array<i64: 4, 128, 128>}, {pipeline_mode = #tpu.pipeline_mode<synchronous>, transform_indices = @transform_2, window_bounds = array<i64: 4, 1, 128>}, {pipeline_mode = #tpu.pipeline_mode<synchronous>, transform_indices = @transform_3, window_bounds = array<i64: 4, 1, 128>}, {pipeline_mode = #tpu.pipeline_mode<synchronous>, transform_indices = @transform_4, window_bounds = array<i64: 4, 1, 128>}, {pipeline_mode = #tpu.pipeline_mode<synchronous>, transform_indices = @transform_5, window_bounds = array<i64: 4, 128, 128>}, {pipeline_mode = #tpu.pipeline_mode<synchronous>, transform_indices = @transform_6, window_bounds = array<i64: 4, 1, 128>}, {pipeline_mode = #tpu.pipeline_mode<synchronous>, transform_indices = @transform_7, window_bounds = array<i64: 4, 128, 128>}, {pipeline_mode = #tpu.pipeline_mode<synchronous>, transform_indices = @transform_8, window_bounds = array<i64: 4, 1, 128>}, {pipeline_mode = #tpu.pipeline_mode<synchronous>, transform_indices = @transform_9, window_bounds = array<i64: 4, 1, 128>}, {pipeline_mode = #tpu.pipeline_mode<synchronous>, transform_indices = @transform_10, window_bounds = array<i64: 4, 1, 128>}, {pipeline_mode = #tpu.pipeline_mode<synchronous>, transform_indices = @transform_11, window_bounds = array<i64: 128, 128>}, {pipeline_mode = #tpu.pipeline_mode<synchronous>, transform_indices = @transform_12, window_bounds = array<i64: 1, 128>}, {pipeline_mode = #tpu.pipeline_mode<synchronous>, transform_indices = @transform_13, window_bounds = array<i64: 8, 128>}]} {
    %c0 = arith.constant 0 : index
    %c0_0 = arith.constant 0 : index
    %0 = vector.load %arg1[%c0, %c0_0] : memref<8x128xf32, #tpu.memory_space<vmem>>, vector<8x128xf32>
    %1 = arith.truncf %0 : vector<8x128xf32> to vector<8x128xbf16>
    %c0_1 = arith.constant 0 : index
    %c0_2 = arith.constant 0 : index
    %c0_3 = arith.constant 0 : index
    %2 = vector.load %arg2[%c0_1, %c0_2, %c0_3] : memref<4x128x128xbf16, #tpu.memory_space<vmem>>, vector<1x128x128xbf16>
    %3 = vector.shape_cast %2 : vector<1x128x128xbf16> to vector<128x128xbf16>
    %cst = arith.constant dense<0.000000e+00> : vector<8x128xf32>
    %4 = tpu.matmul %1, %3, %cst {dimension_numbers = #tpu.dot_dimension_numbers<[1], [0], [0], [1], [0, 0, 1, 1], [], []>} : vector<8x128xbf16>, vector<128x128xbf16>, vector<8x128xf32> -> vector<8x128xf32>
    %c0_4 = arith.constant 0 : index
    %c0_5 = arith.constant 0 : index
    %c0_6 = arith.constant 0 : index
    %5 = vector.load %arg3[%c0_4, %c0_5, %c0_6] : memref<4x1x128xf32, #tpu.memory_space<vmem>>, vector<1x1x128xf32>
    %6 = vector.shape_cast %5 : vector<1x1x128xf32> to vector<1x128xf32>
    %7 = vector.broadcast %6 : vector<1x128xf32> to vector<8x128xf32>
    %8 = arith.addf %4, %7 : vector<8x128xf32>
    %c0_7 = arith.constant 0 : index
    %c0_8 = arith.constant 0 : index
    %c0_9 = arith.constant 0 : index
    %9 = vector.load %arg4[%c0_7, %c0_8, %c0_9] : memref<4x1x128xf32, #tpu.memory_space<vmem>>, vector<1x1x128xf32>
    %10 = vector.shape_cast %9 : vector<1x1x128xf32> to vector<1x128xf32>
    %c0_10 = arith.constant 0 : index
    %c0_11 = arith.constant 0 : index
    %c0_12 = arith.constant 0 : index
    %11 = vector.load %arg5[%c0_10, %c0_11, %c0_12] : memref<4x1x128xf32, #tpu.memory_space<vmem>>, vector<1x1x128xf32>
    %12 = vector.shape_cast %11 : vector<1x1x128xf32> to vector<1x128xf32>
    %cst_13 = arith.constant dense<0.000000e+00> : vector<8xf32>
    %13 = vector.multi_reduction <add>, %8, %cst_13 [1] : vector<8x128xf32> to vector<8xf32>
    %14 = vector.shape_cast %13 : vector<8xf32> to vector<8x1xf32>
    %cst_14 = arith.constant 1.280000e+02 : f32
    %15 = vector.broadcast %cst_14 : f32 to vector<8x1xf32>
    %16 = arith.divf %14, %15 : vector<8x1xf32>
    %17 = arith.mulf %8, %8 : vector<8x128xf32>
    %cst_15 = arith.constant dense<0.000000e+00> : vector<8xf32>
    %18 = vector.multi_reduction <add>, %17, %cst_15 [1] : vector<8x128xf32> to vector<8xf32>
    %19 = vector.shape_cast %18 : vector<8xf32> to vector<8x1xf32>
    %cst_16 = arith.constant 1.280000e+02 : f32
    %20 = vector.broadcast %cst_16 : f32 to vector<8x1xf32>
    %21 = arith.divf %19, %20 : vector<8x1xf32>
    %22 = arith.mulf %16, %16 : vector<8x1xf32>
    %23 = arith.subf %21, %22 : vector<8x1xf32>
    %cst_17 = arith.constant 0.000000e+00 : f32
    %24 = vector.broadcast %cst_17 : f32 to vector<8x1xf32>
    %25 = arith.maximumf %23, %24 : vector<8x1xf32>
    %26 = vector.broadcast %16 : vector<8x1xf32> to vector<8x128xf32>
    %27 = arith.subf %8, %26 : vector<8x128xf32>
    %cst_18 = arith.constant 9.99999974E-6 : f32
    %28 = vector.broadcast %cst_18 : f32 to vector<8x1xf32>
    %29 = arith.addf %25, %28 : vector<8x1xf32>
    %30 = math.rsqrt %29 : vector<8x1xf32>
    %31 = vector.broadcast %30 : vector<8x1xf32> to vector<8x128xf32>
    %32 = arith.mulf %27, %31 : vector<8x128xf32>
    %33 = vector.broadcast %10 : vector<1x128xf32> to vector<8x128xf32>
    %34 = arith.mulf %32, %33 : vector<8x128xf32>
    %35 = vector.broadcast %12 : vector<1x128xf32> to vector<8x128xf32>
    %36 = arith.addf %34, %35 : vector<8x128xf32>
    %37 = arith.truncf %36 : vector<8x128xf32> to vector<8x128xbf16>
    %c0_19 = arith.constant 0 : index
    %c0_20 = arith.constant 0 : index
    %c0_21 = arith.constant 0 : index
    %38 = vector.load %arg6[%c0_19, %c0_20, %c0_21] : memref<4x128x128xbf16, #tpu.memory_space<vmem>>, vector<1x128x128xbf16>
    %39 = vector.shape_cast %38 : vector<1x128x128xbf16> to vector<128x128xbf16>
    %cst_22 = arith.constant dense<0.000000e+00> : vector<8x128xf32>
    %40 = tpu.matmul %37, %39, %cst_22 {dimension_numbers = #tpu.dot_dimension_numbers<[1], [0], [0], [1], [0, 0, 1, 1], [], []>} : vector<8x128xbf16>, vector<128x128xbf16>, vector<8x128xf32> -> vector<8x128xf32>
    %c0_23 = arith.constant 0 : index
    %c0_24 = arith.constant 0 : index
    %c0_25 = arith.constant 0 : index
    %41 = vector.load %arg7[%c0_23, %c0_24, %c0_25] : memref<4x1x128xf32, #tpu.memory_space<vmem>>, vector<1x1x128xf32>
    %42 = vector.shape_cast %41 : vector<1x1x128xf32> to vector<1x128xf32>
    %43 = vector.broadcast %42 : vector<1x128xf32> to vector<8x128xf32>
    %44 = arith.addf %40, %43 : vector<8x128xf32>
    %cst_26 = arith.constant 0.000000e+00 : f32
    %45 = vector.broadcast %cst_26 : f32 to vector<8x128xf32>
    %46 = arith.maximumf %44, %45 : vector<8x128xf32>
    %47 = arith.truncf %46 : vector<8x128xf32> to vector<8x128xbf16>
    %c0_27 = arith.constant 0 : index
    %c0_28 = arith.constant 0 : index
    %c0_29 = arith.constant 0 : index
    %48 = vector.load %arg8[%c0_27, %c0_28, %c0_29] : memref<4x128x128xbf16, #tpu.memory_space<vmem>>, vector<1x128x128xbf16>
    %49 = vector.shape_cast %48 : vector<1x128x128xbf16> to vector<128x128xbf16>
    %cst_30 = arith.constant dense<0.000000e+00> : vector<8x128xf32>
    %50 = tpu.matmul %47, %49, %cst_30 {dimension_numbers = #tpu.dot_dimension_numbers<[1], [0], [0], [1], [0, 0, 1, 1], [], []>} : vector<8x128xbf16>, vector<128x128xbf16>, vector<8x128xf32> -> vector<8x128xf32>
    %51 = arith.addf %36, %50 : vector<8x128xf32>
    %c0_31 = arith.constant 0 : index
    %c0_32 = arith.constant 0 : index
    %c0_33 = arith.constant 0 : index
    %52 = vector.load %arg9[%c0_31, %c0_32, %c0_33] : memref<4x1x128xf32, #tpu.memory_space<vmem>>, vector<1x1x128xf32>
    %53 = vector.shape_cast %52 : vector<1x1x128xf32> to vector<1x128xf32>
    %54 = vector.broadcast %53 : vector<1x128xf32> to vector<8x128xf32>
    %55 = arith.addf %51, %54 : vector<8x128xf32>
    %c0_34 = arith.constant 0 : index
    %c0_35 = arith.constant 0 : index
    %c0_36 = arith.constant 0 : index
    %56 = vector.load %arg10[%c0_34, %c0_35, %c0_36] : memref<4x1x128xf32, #tpu.memory_space<vmem>>, vector<1x1x128xf32>
    %57 = vector.shape_cast %56 : vector<1x1x128xf32> to vector<1x128xf32>
    %c0_37 = arith.constant 0 : index
    %c0_38 = arith.constant 0 : index
    %c0_39 = arith.constant 0 : index
    %58 = vector.load %arg11[%c0_37, %c0_38, %c0_39] : memref<4x1x128xf32, #tpu.memory_space<vmem>>, vector<1x1x128xf32>
    %59 = vector.shape_cast %58 : vector<1x1x128xf32> to vector<1x128xf32>
    %cst_40 = arith.constant dense<0.000000e+00> : vector<8xf32>
    %60 = vector.multi_reduction <add>, %55, %cst_40 [1] : vector<8x128xf32> to vector<8xf32>
    %61 = vector.shape_cast %60 : vector<8xf32> to vector<8x1xf32>
    %cst_41 = arith.constant 1.280000e+02 : f32
    %62 = vector.broadcast %cst_41 : f32 to vector<8x1xf32>
    %63 = arith.divf %61, %62 : vector<8x1xf32>
    %64 = arith.mulf %55, %55 : vector<8x128xf32>
    %cst_42 = arith.constant dense<0.000000e+00> : vector<8xf32>
    %65 = vector.multi_reduction <add>, %64, %cst_42 [1] : vector<8x128xf32> to vector<8xf32>
    %66 = vector.shape_cast %65 : vector<8xf32> to vector<8x1xf32>
    %cst_43 = arith.constant 1.280000e+02 : f32
    %67 = vector.broadcast %cst_43 : f32 to vector<8x1xf32>
    %68 = arith.divf %66, %67 : vector<8x1xf32>
    %69 = arith.mulf %63, %63 : vector<8x1xf32>
    %70 = arith.subf %68, %69 : vector<8x1xf32>
    %cst_44 = arith.constant 0.000000e+00 : f32
    %71 = vector.broadcast %cst_44 : f32 to vector<8x1xf32>
    %72 = arith.maximumf %70, %71 : vector<8x1xf32>
    %73 = vector.broadcast %63 : vector<8x1xf32> to vector<8x128xf32>
    %74 = arith.subf %55, %73 : vector<8x128xf32>
    %cst_45 = arith.constant 9.99999974E-6 : f32
    %75 = vector.broadcast %cst_45 : f32 to vector<8x1xf32>
    %76 = arith.addf %72, %75 : vector<8x1xf32>
    %77 = math.rsqrt %76 : vector<8x1xf32>
    %78 = vector.broadcast %77 : vector<8x1xf32> to vector<8x128xf32>
    %79 = arith.mulf %74, %78 : vector<8x128xf32>
    %80 = vector.broadcast %57 : vector<1x128xf32> to vector<8x128xf32>
    %81 = arith.mulf %79, %80 : vector<8x128xf32>
    %82 = vector.broadcast %59 : vector<1x128xf32> to vector<8x128xf32>
    %83 = arith.addf %81, %82 : vector<8x128xf32>
    %84 = arith.truncf %83 : vector<8x128xf32> to vector<8x128xbf16>
    %c1 = arith.constant 1 : index
    %c0_46 = arith.constant 0 : index
    %c0_47 = arith.constant 0 : index
    %85 = vector.load %arg2[%c1, %c0_46, %c0_47] : memref<4x128x128xbf16, #tpu.memory_space<vmem>>, vector<1x128x128xbf16>
    %86 = vector.shape_cast %85 : vector<1x128x128xbf16> to vector<128x128xbf16>
    %cst_48 = arith.constant dense<0.000000e+00> : vector<8x128xf32>
    %87 = tpu.matmul %84, %86, %cst_48 {dimension_numbers = #tpu.dot_dimension_numbers<[1], [0], [0], [1], [0, 0, 1, 1], [], []>} : vector<8x128xbf16>, vector<128x128xbf16>, vector<8x128xf32> -> vector<8x128xf32>
    %c1_49 = arith.constant 1 : index
    %c0_50 = arith.constant 0 : index
    %c0_51 = arith.constant 0 : index
    %88 = vector.load %arg3[%c1_49, %c0_50, %c0_51] : memref<4x1x128xf32, #tpu.memory_space<vmem>>, vector<1x1x128xf32>
    %89 = vector.shape_cast %88 : vector<1x1x128xf32> to vector<1x128xf32>
    %90 = vector.broadcast %89 : vector<1x128xf32> to vector<8x128xf32>
    %91 = arith.addf %87, %90 : vector<8x128xf32>
    %c1_52 = arith.constant 1 : index
    %c0_53 = arith.constant 0 : index
    %c0_54 = arith.constant 0 : index
    %92 = vector.load %arg4[%c1_52, %c0_53, %c0_54] : memref<4x1x128xf32, #tpu.memory_space<vmem>>, vector<1x1x128xf32>
    %93 = vector.shape_cast %92 : vector<1x1x128xf32> to vector<1x128xf32>
    %c1_55 = arith.constant 1 : index
    %c0_56 = arith.constant 0 : index
    %c0_57 = arith.constant 0 : index
    %94 = vector.load %arg5[%c1_55, %c0_56, %c0_57] : memref<4x1x128xf32, #tpu.memory_space<vmem>>, vector<1x1x128xf32>
    %95 = vector.shape_cast %94 : vector<1x1x128xf32> to vector<1x128xf32>
    %cst_58 = arith.constant dense<0.000000e+00> : vector<8xf32>
    %96 = vector.multi_reduction <add>, %91, %cst_58 [1] : vector<8x128xf32> to vector<8xf32>
    %97 = vector.shape_cast %96 : vector<8xf32> to vector<8x1xf32>
    %cst_59 = arith.constant 1.280000e+02 : f32
    %98 = vector.broadcast %cst_59 : f32 to vector<8x1xf32>
    %99 = arith.divf %97, %98 : vector<8x1xf32>
    %100 = arith.mulf %91, %91 : vector<8x128xf32>
    %cst_60 = arith.constant dense<0.000000e+00> : vector<8xf32>
    %101 = vector.multi_reduction <add>, %100, %cst_60 [1] : vector<8x128xf32> to vector<8xf32>
    %102 = vector.shape_cast %101 : vector<8xf32> to vector<8x1xf32>
    %cst_61 = arith.constant 1.280000e+02 : f32
    %103 = vector.broadcast %cst_61 : f32 to vector<8x1xf32>
    %104 = arith.divf %102, %103 : vector<8x1xf32>
    %105 = arith.mulf %99, %99 : vector<8x1xf32>
    %106 = arith.subf %104, %105 : vector<8x1xf32>
    %cst_62 = arith.constant 0.000000e+00 : f32
    %107 = vector.broadcast %cst_62 : f32 to vector<8x1xf32>
    %108 = arith.maximumf %106, %107 : vector<8x1xf32>
    %109 = vector.broadcast %99 : vector<8x1xf32> to vector<8x128xf32>
    %110 = arith.subf %91, %109 : vector<8x128xf32>
    %cst_63 = arith.constant 9.99999974E-6 : f32
    %111 = vector.broadcast %cst_63 : f32 to vector<8x1xf32>
    %112 = arith.addf %108, %111 : vector<8x1xf32>
    %113 = math.rsqrt %112 : vector<8x1xf32>
    %114 = vector.broadcast %113 : vector<8x1xf32> to vector<8x128xf32>
    %115 = arith.mulf %110, %114 : vector<8x128xf32>
    %116 = vector.broadcast %93 : vector<1x128xf32> to vector<8x128xf32>
    %117 = arith.mulf %115, %116 : vector<8x128xf32>
    %118 = vector.broadcast %95 : vector<1x128xf32> to vector<8x128xf32>
    %119 = arith.addf %117, %118 : vector<8x128xf32>
    %120 = arith.truncf %119 : vector<8x128xf32> to vector<8x128xbf16>
    %c1_64 = arith.constant 1 : index
    %c0_65 = arith.constant 0 : index
    %c0_66 = arith.constant 0 : index
    %121 = vector.load %arg6[%c1_64, %c0_65, %c0_66] : memref<4x128x128xbf16, #tpu.memory_space<vmem>>, vector<1x128x128xbf16>
    %122 = vector.shape_cast %121 : vector<1x128x128xbf16> to vector<128x128xbf16>
    %cst_67 = arith.constant dense<0.000000e+00> : vector<8x128xf32>
    %123 = tpu.matmul %120, %122, %cst_67 {dimension_numbers = #tpu.dot_dimension_numbers<[1], [0], [0], [1], [0, 0, 1, 1], [], []>} : vector<8x128xbf16>, vector<128x128xbf16>, vector<8x128xf32> -> vector<8x128xf32>
    %c1_68 = arith.constant 1 : index
    %c0_69 = arith.constant 0 : index
    %c0_70 = arith.constant 0 : index
    %124 = vector.load %arg7[%c1_68, %c0_69, %c0_70] : memref<4x1x128xf32, #tpu.memory_space<vmem>>, vector<1x1x128xf32>
    %125 = vector.shape_cast %124 : vector<1x1x128xf32> to vector<1x128xf32>
    %126 = vector.broadcast %125 : vector<1x128xf32> to vector<8x128xf32>
    %127 = arith.addf %123, %126 : vector<8x128xf32>
    %cst_71 = arith.constant 0.000000e+00 : f32
    %128 = vector.broadcast %cst_71 : f32 to vector<8x128xf32>
    %129 = arith.maximumf %127, %128 : vector<8x128xf32>
    %130 = arith.truncf %129 : vector<8x128xf32> to vector<8x128xbf16>
    %c1_72 = arith.constant 1 : index
    %c0_73 = arith.constant 0 : index
    %c0_74 = arith.constant 0 : index
    %131 = vector.load %arg8[%c1_72, %c0_73, %c0_74] : memref<4x128x128xbf16, #tpu.memory_space<vmem>>, vector<1x128x128xbf16>
    %132 = vector.shape_cast %131 : vector<1x128x128xbf16> to vector<128x128xbf16>
    %cst_75 = arith.constant dense<0.000000e+00> : vector<8x128xf32>
    %133 = tpu.matmul %130, %132, %cst_75 {dimension_numbers = #tpu.dot_dimension_numbers<[1], [0], [0], [1], [0, 0, 1, 1], [], []>} : vector<8x128xbf16>, vector<128x128xbf16>, vector<8x128xf32> -> vector<8x128xf32>
    %134 = arith.addf %119, %133 : vector<8x128xf32>
    %c1_76 = arith.constant 1 : index
    %c0_77 = arith.constant 0 : index
    %c0_78 = arith.constant 0 : index
    %135 = vector.load %arg9[%c1_76, %c0_77, %c0_78] : memref<4x1x128xf32, #tpu.memory_space<vmem>>, vector<1x1x128xf32>
    %136 = vector.shape_cast %135 : vector<1x1x128xf32> to vector<1x128xf32>
    %137 = vector.broadcast %136 : vector<1x128xf32> to vector<8x128xf32>
    %138 = arith.addf %134, %137 : vector<8x128xf32>
    %c1_79 = arith.constant 1 : index
    %c0_80 = arith.constant 0 : index
    %c0_81 = arith.constant 0 : index
    %139 = vector.load %arg10[%c1_79, %c0_80, %c0_81] : memref<4x1x128xf32, #tpu.memory_space<vmem>>, vector<1x1x128xf32>
    %140 = vector.shape_cast %139 : vector<1x1x128xf32> to vector<1x128xf32>
    %c1_82 = arith.constant 1 : index
    %c0_83 = arith.constant 0 : index
    %c0_84 = arith.constant 0 : index
    %141 = vector.load %arg11[%c1_82, %c0_83, %c0_84] : memref<4x1x128xf32, #tpu.memory_space<vmem>>, vector<1x1x128xf32>
    %142 = vector.shape_cast %141 : vector<1x1x128xf32> to vector<1x128xf32>
    %cst_85 = arith.constant dense<0.000000e+00> : vector<8xf32>
    %143 = vector.multi_reduction <add>, %138, %cst_85 [1] : vector<8x128xf32> to vector<8xf32>
    %144 = vector.shape_cast %143 : vector<8xf32> to vector<8x1xf32>
    %cst_86 = arith.constant 1.280000e+02 : f32
    %145 = vector.broadcast %cst_86 : f32 to vector<8x1xf32>
    %146 = arith.divf %144, %145 : vector<8x1xf32>
    %147 = arith.mulf %138, %138 : vector<8x128xf32>
    %cst_87 = arith.constant dense<0.000000e+00> : vector<8xf32>
    %148 = vector.multi_reduction <add>, %147, %cst_87 [1] : vector<8x128xf32> to vector<8xf32>
    %149 = vector.shape_cast %148 : vector<8xf32> to vector<8x1xf32>
    %cst_88 = arith.constant 1.280000e+02 : f32
    %150 = vector.broadcast %cst_88 : f32 to vector<8x1xf32>
    %151 = arith.divf %149, %150 : vector<8x1xf32>
    %152 = arith.mulf %146, %146 : vector<8x1xf32>
    %153 = arith.subf %151, %152 : vector<8x1xf32>
    %cst_89 = arith.constant 0.000000e+00 : f32
    %154 = vector.broadcast %cst_89 : f32 to vector<8x1xf32>
    %155 = arith.maximumf %153, %154 : vector<8x1xf32>
    %156 = vector.broadcast %146 : vector<8x1xf32> to vector<8x128xf32>
    %157 = arith.subf %138, %156 : vector<8x128xf32>
    %cst_90 = arith.constant 9.99999974E-6 : f32
    %158 = vector.broadcast %cst_90 : f32 to vector<8x1xf32>
    %159 = arith.addf %155, %158 : vector<8x1xf32>
    %160 = math.rsqrt %159 : vector<8x1xf32>
    %161 = vector.broadcast %160 : vector<8x1xf32> to vector<8x128xf32>
    %162 = arith.mulf %157, %161 : vector<8x128xf32>
    %163 = vector.broadcast %140 : vector<1x128xf32> to vector<8x128xf32>
    %164 = arith.mulf %162, %163 : vector<8x128xf32>
    %165 = vector.broadcast %142 : vector<1x128xf32> to vector<8x128xf32>
    %166 = arith.addf %164, %165 : vector<8x128xf32>
    %167 = arith.truncf %166 : vector<8x128xf32> to vector<8x128xbf16>
    %c2 = arith.constant 2 : index
    %c0_91 = arith.constant 0 : index
    %c0_92 = arith.constant 0 : index
    %168 = vector.load %arg2[%c2, %c0_91, %c0_92] : memref<4x128x128xbf16, #tpu.memory_space<vmem>>, vector<1x128x128xbf16>
    %169 = vector.shape_cast %168 : vector<1x128x128xbf16> to vector<128x128xbf16>
    %cst_93 = arith.constant dense<0.000000e+00> : vector<8x128xf32>
    %170 = tpu.matmul %167, %169, %cst_93 {dimension_numbers = #tpu.dot_dimension_numbers<[1], [0], [0], [1], [0, 0, 1, 1], [], []>} : vector<8x128xbf16>, vector<128x128xbf16>, vector<8x128xf32> -> vector<8x128xf32>
    %c2_94 = arith.constant 2 : index
    %c0_95 = arith.constant 0 : index
    %c0_96 = arith.constant 0 : index
    %171 = vector.load %arg3[%c2_94, %c0_95, %c0_96] : memref<4x1x128xf32, #tpu.memory_space<vmem>>, vector<1x1x128xf32>
    %172 = vector.shape_cast %171 : vector<1x1x128xf32> to vector<1x128xf32>
    %173 = vector.broadcast %172 : vector<1x128xf32> to vector<8x128xf32>
    %174 = arith.addf %170, %173 : vector<8x128xf32>
    %c2_97 = arith.constant 2 : index
    %c0_98 = arith.constant 0 : index
    %c0_99 = arith.constant 0 : index
    %175 = vector.load %arg4[%c2_97, %c0_98, %c0_99] : memref<4x1x128xf32, #tpu.memory_space<vmem>>, vector<1x1x128xf32>
    %176 = vector.shape_cast %175 : vector<1x1x128xf32> to vector<1x128xf32>
    %c2_100 = arith.constant 2 : index
    %c0_101 = arith.constant 0 : index
    %c0_102 = arith.constant 0 : index
    %177 = vector.load %arg5[%c2_100, %c0_101, %c0_102] : memref<4x1x128xf32, #tpu.memory_space<vmem>>, vector<1x1x128xf32>
    %178 = vector.shape_cast %177 : vector<1x1x128xf32> to vector<1x128xf32>
    %cst_103 = arith.constant dense<0.000000e+00> : vector<8xf32>
    %179 = vector.multi_reduction <add>, %174, %cst_103 [1] : vector<8x128xf32> to vector<8xf32>
    %180 = vector.shape_cast %179 : vector<8xf32> to vector<8x1xf32>
    %cst_104 = arith.constant 1.280000e+02 : f32
    %181 = vector.broadcast %cst_104 : f32 to vector<8x1xf32>
    %182 = arith.divf %180, %181 : vector<8x1xf32>
    %183 = arith.mulf %174, %174 : vector<8x128xf32>
    %cst_105 = arith.constant dense<0.000000e+00> : vector<8xf32>
    %184 = vector.multi_reduction <add>, %183, %cst_105 [1] : vector<8x128xf32> to vector<8xf32>
    %185 = vector.shape_cast %184 : vector<8xf32> to vector<8x1xf32>
    %cst_106 = arith.constant 1.280000e+02 : f32
    %186 = vector.broadcast %cst_106 : f32 to vector<8x1xf32>
    %187 = arith.divf %185, %186 : vector<8x1xf32>
    %188 = arith.mulf %182, %182 : vector<8x1xf32>
    %189 = arith.subf %187, %188 : vector<8x1xf32>
    %cst_107 = arith.constant 0.000000e+00 : f32
    %190 = vector.broadcast %cst_107 : f32 to vector<8x1xf32>
    %191 = arith.maximumf %189, %190 : vector<8x1xf32>
    %192 = vector.broadcast %182 : vector<8x1xf32> to vector<8x128xf32>
    %193 = arith.subf %174, %192 : vector<8x128xf32>
    %cst_108 = arith.constant 9.99999974E-6 : f32
    %194 = vector.broadcast %cst_108 : f32 to vector<8x1xf32>
    %195 = arith.addf %191, %194 : vector<8x1xf32>
    %196 = math.rsqrt %195 : vector<8x1xf32>
    %197 = vector.broadcast %196 : vector<8x1xf32> to vector<8x128xf32>
    %198 = arith.mulf %193, %197 : vector<8x128xf32>
    %199 = vector.broadcast %176 : vector<1x128xf32> to vector<8x128xf32>
    %200 = arith.mulf %198, %199 : vector<8x128xf32>
    %201 = vector.broadcast %178 : vector<1x128xf32> to vector<8x128xf32>
    %202 = arith.addf %200, %201 : vector<8x128xf32>
    %203 = arith.truncf %202 : vector<8x128xf32> to vector<8x128xbf16>
    %c2_109 = arith.constant 2 : index
    %c0_110 = arith.constant 0 : index
    %c0_111 = arith.constant 0 : index
    %204 = vector.load %arg6[%c2_109, %c0_110, %c0_111] : memref<4x128x128xbf16, #tpu.memory_space<vmem>>, vector<1x128x128xbf16>
    %205 = vector.shape_cast %204 : vector<1x128x128xbf16> to vector<128x128xbf16>
    %cst_112 = arith.constant dense<0.000000e+00> : vector<8x128xf32>
    %206 = tpu.matmul %203, %205, %cst_112 {dimension_numbers = #tpu.dot_dimension_numbers<[1], [0], [0], [1], [0, 0, 1, 1], [], []>} : vector<8x128xbf16>, vector<128x128xbf16>, vector<8x128xf32> -> vector<8x128xf32>
    %c2_113 = arith.constant 2 : index
    %c0_114 = arith.constant 0 : index
    %c0_115 = arith.constant 0 : index
    %207 = vector.load %arg7[%c2_113, %c0_114, %c0_115] : memref<4x1x128xf32, #tpu.memory_space<vmem>>, vector<1x1x128xf32>
    %208 = vector.shape_cast %207 : vector<1x1x128xf32> to vector<1x128xf32>
    %209 = vector.broadcast %208 : vector<1x128xf32> to vector<8x128xf32>
    %210 = arith.addf %206, %209 : vector<8x128xf32>
    %cst_116 = arith.constant 0.000000e+00 : f32
    %211 = vector.broadcast %cst_116 : f32 to vector<8x128xf32>
    %212 = arith.maximumf %210, %211 : vector<8x128xf32>
    %213 = arith.truncf %212 : vector<8x128xf32> to vector<8x128xbf16>
    %c2_117 = arith.constant 2 : index
    %c0_118 = arith.constant 0 : index
    %c0_119 = arith.constant 0 : index
    %214 = vector.load %arg8[%c2_117, %c0_118, %c0_119] : memref<4x128x128xbf16, #tpu.memory_space<vmem>>, vector<1x128x128xbf16>
    %215 = vector.shape_cast %214 : vector<1x128x128xbf16> to vector<128x128xbf16>
    %cst_120 = arith.constant dense<0.000000e+00> : vector<8x128xf32>
    %216 = tpu.matmul %213, %215, %cst_120 {dimension_numbers = #tpu.dot_dimension_numbers<[1], [0], [0], [1], [0, 0, 1, 1], [], []>} : vector<8x128xbf16>, vector<128x128xbf16>, vector<8x128xf32> -> vector<8x128xf32>
    %217 = arith.addf %202, %216 : vector<8x128xf32>
    %c2_121 = arith.constant 2 : index
    %c0_122 = arith.constant 0 : index
    %c0_123 = arith.constant 0 : index
    %218 = vector.load %arg9[%c2_121, %c0_122, %c0_123] : memref<4x1x128xf32, #tpu.memory_space<vmem>>, vector<1x1x128xf32>
    %219 = vector.shape_cast %218 : vector<1x1x128xf32> to vector<1x128xf32>
    %220 = vector.broadcast %219 : vector<1x128xf32> to vector<8x128xf32>
    %221 = arith.addf %217, %220 : vector<8x128xf32>
    %c2_124 = arith.constant 2 : index
    %c0_125 = arith.constant 0 : index
    %c0_126 = arith.constant 0 : index
    %222 = vector.load %arg10[%c2_124, %c0_125, %c0_126] : memref<4x1x128xf32, #tpu.memory_space<vmem>>, vector<1x1x128xf32>
    %223 = vector.shape_cast %222 : vector<1x1x128xf32> to vector<1x128xf32>
    %c2_127 = arith.constant 2 : index
    %c0_128 = arith.constant 0 : index
    %c0_129 = arith.constant 0 : index
    %224 = vector.load %arg11[%c2_127, %c0_128, %c0_129] : memref<4x1x128xf32, #tpu.memory_space<vmem>>, vector<1x1x128xf32>
    %225 = vector.shape_cast %224 : vector<1x1x128xf32> to vector<1x128xf32>
    %cst_130 = arith.constant dense<0.000000e+00> : vector<8xf32>
    %226 = vector.multi_reduction <add>, %221, %cst_130 [1] : vector<8x128xf32> to vector<8xf32>
    %227 = vector.shape_cast %226 : vector<8xf32> to vector<8x1xf32>
    %cst_131 = arith.constant 1.280000e+02 : f32
    %228 = vector.broadcast %cst_131 : f32 to vector<8x1xf32>
    %229 = arith.divf %227, %228 : vector<8x1xf32>
    %230 = arith.mulf %221, %221 : vector<8x128xf32>
    %cst_132 = arith.constant dense<0.000000e+00> : vector<8xf32>
    %231 = vector.multi_reduction <add>, %230, %cst_132 [1] : vector<8x128xf32> to vector<8xf32>
    %232 = vector.shape_cast %231 : vector<8xf32> to vector<8x1xf32>
    %cst_133 = arith.constant 1.280000e+02 : f32
    %233 = vector.broadcast %cst_133 : f32 to vector<8x1xf32>
    %234 = arith.divf %232, %233 : vector<8x1xf32>
    %235 = arith.mulf %229, %229 : vector<8x1xf32>
    %236 = arith.subf %234, %235 : vector<8x1xf32>
    %cst_134 = arith.constant 0.000000e+00 : f32
    %237 = vector.broadcast %cst_134 : f32 to vector<8x1xf32>
    %238 = arith.maximumf %236, %237 : vector<8x1xf32>
    %239 = vector.broadcast %229 : vector<8x1xf32> to vector<8x128xf32>
    %240 = arith.subf %221, %239 : vector<8x128xf32>
    %cst_135 = arith.constant 9.99999974E-6 : f32
    %241 = vector.broadcast %cst_135 : f32 to vector<8x1xf32>
    %242 = arith.addf %238, %241 : vector<8x1xf32>
    %243 = math.rsqrt %242 : vector<8x1xf32>
    %244 = vector.broadcast %243 : vector<8x1xf32> to vector<8x128xf32>
    %245 = arith.mulf %240, %244 : vector<8x128xf32>
    %246 = vector.broadcast %223 : vector<1x128xf32> to vector<8x128xf32>
    %247 = arith.mulf %245, %246 : vector<8x128xf32>
    %248 = vector.broadcast %225 : vector<1x128xf32> to vector<8x128xf32>
    %249 = arith.addf %247, %248 : vector<8x128xf32>
    %250 = arith.truncf %249 : vector<8x128xf32> to vector<8x128xbf16>
    %c3 = arith.constant 3 : index
    %c0_136 = arith.constant 0 : index
    %c0_137 = arith.constant 0 : index
    %251 = vector.load %arg2[%c3, %c0_136, %c0_137] : memref<4x128x128xbf16, #tpu.memory_space<vmem>>, vector<1x128x128xbf16>
    %252 = vector.shape_cast %251 : vector<1x128x128xbf16> to vector<128x128xbf16>
    %cst_138 = arith.constant dense<0.000000e+00> : vector<8x128xf32>
    %253 = tpu.matmul %250, %252, %cst_138 {dimension_numbers = #tpu.dot_dimension_numbers<[1], [0], [0], [1], [0, 0, 1, 1], [], []>} : vector<8x128xbf16>, vector<128x128xbf16>, vector<8x128xf32> -> vector<8x128xf32>
    %c3_139 = arith.constant 3 : index
    %c0_140 = arith.constant 0 : index
    %c0_141 = arith.constant 0 : index
    %254 = vector.load %arg3[%c3_139, %c0_140, %c0_141] : memref<4x1x128xf32, #tpu.memory_space<vmem>>, vector<1x1x128xf32>
    %255 = vector.shape_cast %254 : vector<1x1x128xf32> to vector<1x128xf32>
    %256 = vector.broadcast %255 : vector<1x128xf32> to vector<8x128xf32>
    %257 = arith.addf %253, %256 : vector<8x128xf32>
    %c3_142 = arith.constant 3 : index
    %c0_143 = arith.constant 0 : index
    %c0_144 = arith.constant 0 : index
    %258 = vector.load %arg4[%c3_142, %c0_143, %c0_144] : memref<4x1x128xf32, #tpu.memory_space<vmem>>, vector<1x1x128xf32>
    %259 = vector.shape_cast %258 : vector<1x1x128xf32> to vector<1x128xf32>
    %c3_145 = arith.constant 3 : index
    %c0_146 = arith.constant 0 : index
    %c0_147 = arith.constant 0 : index
    %260 = vector.load %arg5[%c3_145, %c0_146, %c0_147] : memref<4x1x128xf32, #tpu.memory_space<vmem>>, vector<1x1x128xf32>
    %261 = vector.shape_cast %260 : vector<1x1x128xf32> to vector<1x128xf32>
    %cst_148 = arith.constant dense<0.000000e+00> : vector<8xf32>
    %262 = vector.multi_reduction <add>, %257, %cst_148 [1] : vector<8x128xf32> to vector<8xf32>
    %263 = vector.shape_cast %262 : vector<8xf32> to vector<8x1xf32>
    %cst_149 = arith.constant 1.280000e+02 : f32
    %264 = vector.broadcast %cst_149 : f32 to vector<8x1xf32>
    %265 = arith.divf %263, %264 : vector<8x1xf32>
    %266 = arith.mulf %257, %257 : vector<8x128xf32>
    %cst_150 = arith.constant dense<0.000000e+00> : vector<8xf32>
    %267 = vector.multi_reduction <add>, %266, %cst_150 [1] : vector<8x128xf32> to vector<8xf32>
    %268 = vector.shape_cast %267 : vector<8xf32> to vector<8x1xf32>
    %cst_151 = arith.constant 1.280000e+02 : f32
    %269 = vector.broadcast %cst_151 : f32 to vector<8x1xf32>
    %270 = arith.divf %268, %269 : vector<8x1xf32>
    %271 = arith.mulf %265, %265 : vector<8x1xf32>
    %272 = arith.subf %270, %271 : vector<8x1xf32>
    %cst_152 = arith.constant 0.000000e+00 : f32
    %273 = vector.broadcast %cst_152 : f32 to vector<8x1xf32>
    %274 = arith.maximumf %272, %273 : vector<8x1xf32>
    %275 = vector.broadcast %265 : vector<8x1xf32> to vector<8x128xf32>
    %276 = arith.subf %257, %275 : vector<8x128xf32>
    %cst_153 = arith.constant 9.99999974E-6 : f32
    %277 = vector.broadcast %cst_153 : f32 to vector<8x1xf32>
    %278 = arith.addf %274, %277 : vector<8x1xf32>
    %279 = math.rsqrt %278 : vector<8x1xf32>
    %280 = vector.broadcast %279 : vector<8x1xf32> to vector<8x128xf32>
    %281 = arith.mulf %276, %280 : vector<8x128xf32>
    %282 = vector.broadcast %259 : vector<1x128xf32> to vector<8x128xf32>
    %283 = arith.mulf %281, %282 : vector<8x128xf32>
    %284 = vector.broadcast %261 : vector<1x128xf32> to vector<8x128xf32>
    %285 = arith.addf %283, %284 : vector<8x128xf32>
    %286 = arith.truncf %285 : vector<8x128xf32> to vector<8x128xbf16>
    %c3_154 = arith.constant 3 : index
    %c0_155 = arith.constant 0 : index
    %c0_156 = arith.constant 0 : index
    %287 = vector.load %arg6[%c3_154, %c0_155, %c0_156] : memref<4x128x128xbf16, #tpu.memory_space<vmem>>, vector<1x128x128xbf16>
    %288 = vector.shape_cast %287 : vector<1x128x128xbf16> to vector<128x128xbf16>
    %cst_157 = arith.constant dense<0.000000e+00> : vector<8x128xf32>
    %289 = tpu.matmul %286, %288, %cst_157 {dimension_numbers = #tpu.dot_dimension_numbers<[1], [0], [0], [1], [0, 0, 1, 1], [], []>} : vector<8x128xbf16>, vector<128x128xbf16>, vector<8x128xf32> -> vector<8x128xf32>
    %c3_158 = arith.constant 3 : index
    %c0_159 = arith.constant 0 : index
    %c0_160 = arith.constant 0 : index
    %290 = vector.load %arg7[%c3_158, %c0_159, %c0_160] : memref<4x1x128xf32, #tpu.memory_space<vmem>>, vector<1x1x128xf32>
    %291 = vector.shape_cast %290 : vector<1x1x128xf32> to vector<1x128xf32>
    %292 = vector.broadcast %291 : vector<1x128xf32> to vector<8x128xf32>
    %293 = arith.addf %289, %292 : vector<8x128xf32>
    %cst_161 = arith.constant 0.000000e+00 : f32
    %294 = vector.broadcast %cst_161 : f32 to vector<8x128xf32>
    %295 = arith.maximumf %293, %294 : vector<8x128xf32>
    %296 = arith.truncf %295 : vector<8x128xf32> to vector<8x128xbf16>
    %c3_162 = arith.constant 3 : index
    %c0_163 = arith.constant 0 : index
    %c0_164 = arith.constant 0 : index
    %297 = vector.load %arg8[%c3_162, %c0_163, %c0_164] : memref<4x128x128xbf16, #tpu.memory_space<vmem>>, vector<1x128x128xbf16>
    %298 = vector.shape_cast %297 : vector<1x128x128xbf16> to vector<128x128xbf16>
    %cst_165 = arith.constant dense<0.000000e+00> : vector<8x128xf32>
    %299 = tpu.matmul %296, %298, %cst_165 {dimension_numbers = #tpu.dot_dimension_numbers<[1], [0], [0], [1], [0, 0, 1, 1], [], []>} : vector<8x128xbf16>, vector<128x128xbf16>, vector<8x128xf32> -> vector<8x128xf32>
    %300 = arith.addf %285, %299 : vector<8x128xf32>
    %c3_166 = arith.constant 3 : index
    %c0_167 = arith.constant 0 : index
    %c0_168 = arith.constant 0 : index
    %301 = vector.load %arg9[%c3_166, %c0_167, %c0_168] : memref<4x1x128xf32, #tpu.memory_space<vmem>>, vector<1x1x128xf32>
    %302 = vector.shape_cast %301 : vector<1x1x128xf32> to vector<1x128xf32>
    %303 = vector.broadcast %302 : vector<1x128xf32> to vector<8x128xf32>
    %304 = arith.addf %300, %303 : vector<8x128xf32>
    %cst_169 = arith.constant dense<0.000000e+00> : vector<8xf32>
    %305 = vector.multi_reduction <add>, %304, %cst_169 [1] : vector<8x128xf32> to vector<8xf32>
    %306 = vector.shape_cast %305 : vector<8xf32> to vector<8x1xf32>
    %cst_170 = arith.constant 1.280000e+02 : f32
    %307 = vector.broadcast %cst_170 : f32 to vector<8x1xf32>
    %308 = arith.divf %306, %307 : vector<8x1xf32>
    %309 = arith.mulf %304, %304 : vector<8x128xf32>
    %cst_171 = arith.constant dense<0.000000e+00> : vector<8xf32>
    %310 = vector.multi_reduction <add>, %309, %cst_171 [1] : vector<8x128xf32> to vector<8xf32>
    %311 = vector.shape_cast %310 : vector<8xf32> to vector<8x1xf32>
    %cst_172 = arith.constant 1.280000e+02 : f32
    %312 = vector.broadcast %cst_172 : f32 to vector<8x1xf32>
    %313 = arith.divf %311, %312 : vector<8x1xf32>
    %314 = arith.mulf %308, %308 : vector<8x1xf32>
    %315 = arith.subf %313, %314 : vector<8x1xf32>
    %cst_173 = arith.constant 0.000000e+00 : f32
    %316 = vector.broadcast %cst_173 : f32 to vector<8x1xf32>
    %317 = arith.maximumf %315, %316 : vector<8x1xf32>
    %318 = vector.broadcast %308 : vector<8x1xf32> to vector<8x128xf32>
    %319 = arith.subf %304, %318 : vector<8x128xf32>
    %cst_174 = arith.constant 9.99999974E-6 : f32
    %320 = vector.broadcast %cst_174 : f32 to vector<8x1xf32>
    %321 = arith.addf %317, %320 : vector<8x1xf32>
    %322 = math.rsqrt %321 : vector<8x1xf32>
    %323 = vector.broadcast %322 : vector<8x1xf32> to vector<8x128xf32>
    %324 = arith.mulf %319, %323 : vector<8x128xf32>
    %325 = arith.truncf %324 : vector<8x128xf32> to vector<8x128xbf16>
    %c0_175 = arith.constant 0 : index
    %c0_176 = arith.constant 0 : index
    %326 = vector.load %arg12[%c0_175, %c0_176] : memref<128x128xbf16, #tpu.memory_space<vmem>>, vector<128x128xbf16>
    %cst_177 = arith.constant dense<0.000000e+00> : vector<8x128xf32>
    %327 = tpu.matmul %325, %326, %cst_177 {dimension_numbers = #tpu.dot_dimension_numbers<[1], [0], [0], [1], [0, 0, 1, 1], [], []>} : vector<8x128xbf16>, vector<128x128xbf16>, vector<8x128xf32> -> vector<8x128xf32>
    %c0_178 = arith.constant 0 : index
    %c0_179 = arith.constant 0 : index
    %328 = vector.load %arg13[%c0_178, %c0_179] : memref<1x128xf32, #tpu.memory_space<vmem>>, vector<1x128xf32>
    %329 = vector.broadcast %328 : vector<1x128xf32> to vector<8x128xf32>
    %330 = arith.addf %327, %329 : vector<8x128xf32>
    %c0_180 = arith.constant 0 : index
    %c0_181 = arith.constant 0 : index
    %331 = vector.load %arg14[%c0_180, %c0_181] : memref<8x128xf32, #tpu.memory_space<vmem>>, vector<8x128xf32>
    tpu.vector_store %arg14[%c0_180, %c0_181], %330 {strides = array<i32>} : memref<8x128xf32, #tpu.memory_space<vmem>>, vector<8x128xf32>,
    return
  }
  func.func @transform_0(%arg0: i32) -> (i32, i32) {
    %c0_i32 = arith.constant 0 : i32
    %c0_i32_0 = arith.constant 0 : i32
    %c0_i32_1 = arith.constant 0 : i32
    return %c0_i32, %c0_i32_0 : i32, i32
  }
  func.func @transform_1(%arg0: i32) -> (i32, i32, i32) {
    %c0_i32 = arith.constant 0 : i32
    %c0_i32_0 = arith.constant 0 : i32
    %c0_i32_1 = arith.constant 0 : i32
    %c0_i32_2 = arith.constant 0 : i32
    return %c0_i32, %c0_i32_0, %c0_i32_1 : i32, i32, i32
  }
  func.func @transform_2(%arg0: i32) -> (i32, i32, i32) {
    %c0_i32 = arith.constant 0 : i32
    %c0_i32_0 = arith.constant 0 : i32
    %c0_i32_1 = arith.constant 0 : i32
    %c0_i32_2 = arith.constant 0 : i32
    return %c0_i32, %c0_i32_0, %c0_i32_1 : i32, i32, i32
  }
  func.func @transform_3(%arg0: i32) -> (i32, i32, i32) {
    %c0_i32 = arith.constant 0 : i32
    %c0_i32_0 = arith.constant 0 : i32
    %c0_i32_1 = arith.constant 0 : i32
    %c0_i32_2 = arith.constant 0 : i32
    return %c0_i32, %c0_i32_0, %c0_i32_1 : i32, i32, i32
  }
  func.func @transform_4(%arg0: i32) -> (i32, i32, i32) {
    %c0_i32 = arith.constant 0 : i32
    %c0_i32_0 = arith.constant 0 : i32
    %c0_i32_1 = arith.constant 0 : i32
    %c0_i32_2 = arith.constant 0 : i32
    return %c0_i32, %c0_i32_0, %c0_i32_1 : i32, i32, i32
  }
  func.func @transform_5(%arg0: i32) -> (i32, i32, i32) {
    %c0_i32 = arith.constant 0 : i32
    %c0_i32_0 = arith.constant 0 : i32
    %c0_i32_1 = arith.constant 0 : i32
    %c0_i32_2 = arith.constant 0 : i32
    return %c0_i32, %c0_i32_0, %c0_i32_1 : i32, i32, i32
  }
  func.func @transform_6(%arg0: i32) -> (i32, i32, i32) {
    %c0_i32 = arith.constant 0 : i32
    %c0_i32_0 = arith.constant 0 : i32
    %c0_i32_1 = arith.constant 0 : i32
    %c0_i32_2 = arith.constant 0 : i32
    return %c0_i32, %c0_i32_0, %c0_i32_1 : i32, i32, i32
  }
  func.func @transform_7(%arg0: i32) -> (i32, i32, i32) {
    %c0_i32 = arith.constant 0 : i32
    %c0_i32_0 = arith.constant 0 : i32
    %c0_i32_1 = arith.constant 0 : i32
    %c0_i32_2 = arith.constant 0 : i32
    return %c0_i32, %c0_i32_0, %c0_i32_1 : i32, i32, i32
  }
  func.func @transform_8(%arg0: i32) -> (i32, i32, i32) {
    %c0_i32 = arith.constant 0 : i32
    %c0_i32_0 = arith.constant 0 : i32
    %c0_i32_1 = arith.constant 0 : i32
    %c0_i32_2 = arith.constant 0 : i32
    return %c0_i32, %c0_i32_0, %c0_i32_1 : i32, i32, i32
  }
  func.func @transform_9(%arg0: i32) -> (i32, i32, i32) {
    %c0_i32 = arith.constant 0 : i32
    %c0_i32_0 = arith.constant 0 : i32
    %c0_i32_1 = arith.constant 0 : i32
    %c0_i32_2 = arith.constant 0 : i32
    return %c0_i32, %c0_i32_0, %c0_i32_1 : i32, i32, i32
  }
  func.func @transform_10(%arg0: i32) -> (i32, i32, i32) {
    %c0_i32 = arith.constant 0 : i32
    %c0_i32_0 = arith.constant 0 : i32
    %c0_i32_1 = arith.constant 0 : i32
    %c0_i32_2 = arith.constant 0 : i32
    return %c0_i32, %c0_i32_0, %c0_i32_1 : i32, i32, i32
  }
  func.func @transform_11(%arg0: i32) -> (i32, i32) {
    %c0_i32 = arith.constant 0 : i32
    %c0_i32_0 = arith.constant 0 : i32
    %c0_i32_1 = arith.constant 0 : i32
    return %c0_i32, %c0_i32_0 : i32, i32
  }
  func.func @transform_12(%arg0: i32) -> (i32, i32) {
    %c0_i32 = arith.constant 0 : i32
    %c0_i32_0 = arith.constant 0 : i32
    %c0_i32_1 = arith.constant 0 : i32
    return %c0_i32, %c0_i32_0 : i32, i32
  }
  func.func @transform_13(%arg0: i32) -> (i32, i32) {
    %c0_i32 = arith.constant 0 : i32
    %c0_i32_0 = arith.constant 0 : i32
    %c0_i32_1 = arith.constant 0 : i32
    return %c0_i32, %c0_i32_0 : i32, i32
  }
}

</mosaic_0001>

<llo_original>
// kernel: medium_classifier.1
$region0: #{medium_classifier.1}
  #allocation0 [shape = 'u32[]', space=smem, size = 0x4, offset = 0x4, fixed_abs, tag = 'smem constant byte address 0x4 - core index']
  #allocation1 [shape = 'u32[144,128]{1,0:T(1,128)}', space=vmem, size = 0x12000, scoped, tag = 'internal scratch']
  %s0 = inlined_call_operand.hbm [shape: f32[8,128], index: 0, kind: input, shape index: {}]
  %s1 = inlined_call_operand.hbm [shape: bf16[4,128,128], index: 1, kind: input, shape index: {}]
  %s2 = inlined_call_operand.vmem [shape: f32[4,1,128], index: 2, kind: input, shape index: {}]
  %s3 = inlined_call_operand.vmem [shape: f32[4,1,128], index: 3, kind: input, shape index: {}]
  %s4 = inlined_call_operand.vmem [shape: f32[4,1,128], index: 4, kind: input, shape index: {}]
  %s5 = inlined_call_operand.hbm [shape: bf16[4,128,128], index: 5, kind: input, shape index: {}]
  %s6 = inlined_call_operand.hbm [shape: f32[4,1,128], index: 6, kind: input, shape index: {}]
  %s7 = inlined_call_operand.hbm [shape: bf16[4,128,128], index: 7, kind: input, shape index: {}]
  %s8 = inlined_call_operand.hbm [shape: f32[4,1,128], index: 8, kind: input, shape index: {}]
  %s9 = inlined_call_operand.vmem [shape: f32[4,1,128], index: 9, kind: input, shape index: {}]
  %s10 = inlined_call_operand.hbm [shape: f32[4,1,128], index: 10, kind: input, shape index: {}]
  %s11 = inlined_call_operand.hbm [shape: bf16[128,128], index: 11, kind: input, shape index: {}]
  %s12 = inlined_call_operand.vmem [shape: f32[1,128], index: 12, kind: input, shape index: {}]
  %s13 = inlined_call_operand.hbm [shape: f32[8,128], index: 13, kind: output, shape index: {}]
  %s14 = sld [smem:[#allocation0]]
  $region94: #{medium_classifier.1} parent=0
    _
  %s16 = ssub.s32 1, %s14
  %s17 = scalar_select 0, %s16, %s14
  $region1: #{medium_classifier.1} parent=0
    #allocation2 [shape = 'u8[4096]{0}', space=vmem, size = 0x1000, scoped, tag = 'input window, operand 0, single buffered']
    #allocation3 [shape = 's32[1]{0}', space=sflag, size = 0x4, scoped, tag = 'scoped memory for medium_classifier.1']
    #allocation4 [shape = 's32[1]{0}', space=sflag, size = 0x4, scoped, tag = 'scoped memory for medium_classifier.1']
    #allocation5 [shape = 'u8[131072]{0}', space=vmem, size = 0x20000, scoped, tag = 'input window, operand 1, single buffered']
    #allocation6 [shape = 's32[1]{0}', space=sflag, size = 0x4, scoped, tag = 'scoped memory for medium_classifier.1']
    #allocation7 [shape = 'u8[131072]{0}', space=vmem, size = 0x20000, scoped, tag = 'input window, operand 5, single buffered']
    #allocation8 [shape = 'u8[2048]{0}', space=vmem, size = 0x800, scoped, tag = 'input window, operand 6, single buffered']
    #allocation9 [shape = 's32[1]{0}', space=sflag, size = 0x4, scoped, tag = 'scoped memory for medium_classifier.1']
    #allocation10 [shape = 'u8[131072]{0}', space=vmem, size = 0x20000, scoped, tag = 'input window, operand 7, single buffered']
    #allocation11 [shape = 'u8[2048]{0}', space=vmem, size = 0x800, scoped, tag = 'input window, operand 8, single buffered']
    #allocation12 [shape = 's32[1]{0}', space=sflag, size = 0x4, scoped, tag = 'scoped memory for medium_classifier.1']
    #allocation13 [shape = 'u8[2048]{0}', space=vmem, size = 0x800, scoped, tag = 'input window, operand 10, single buffered']
    #allocation14 [shape = 'u8[32768]{0}', space=vmem, size = 0x8000, scoped, tag = 'input window, operand 11, single buffered']
    #allocation15 [shape = 's32[1]{0}', space=sflag, size = 0x4, scoped, tag = 'scoped memory for medium_classifier.1']
    #allocation16 [shape = 'u8[4096]{0}', space=vmem, size = 0x1000, scoped, tag = 'output window, operand 0, single buffered']
    %18 = vsyncpa [#allocation3], 0
    %19 = vsyncpa [#allocation6], 0
    %20 = vsyncpa [#allocation9], 0
    %21 = vsyncpa [#allocation12], 0
    %22 = vsyncpa [#allocation15], 0
    %23 = vsyncpa [#allocation4], 0
    // Predicated region
    $region2: #{medium_classifier.1} parent=1 // pred_check
      _
    $region3: #{medium_classifier.1} parent=1 // pred_check_branch
      %25 = sbr.rel (0) target = $region5
    $region4: #{medium_classifier.1} parent=1 // pred_region
      %s27 = ssub.s32 128, 128
      %28 = vsyncadd [#allocation3], %s27
      %s30 = sshll.u32 [#allocation2], 4
      %s31 = int_to_ptr.vmem [resolvable:$true] %s30
      %33 = dma.hbm_to_vmem [thread:$0]  %s0, 128, %s31, [#allocation3]
    $region5: #{medium_classifier.1} parent=1 // pred_fallthru
      _
    // Predicated region
    $region6: #{medium_classifier.1} parent=1 // pred_check
      _
    $region7: #{medium_classifier.1} parent=1 // pred_check_branch
      %35 = sbr.rel (0) target = $region9
    $region8: #{medium_classifier.1} parent=1 // pred_region
      %s37 = ssub.s32 4096, 4096
      %38 = vsyncadd [#allocation6], %s37
      %s39 = sshll.u32 [#allocation5], 4
      %s40 = int_to_ptr.vmem [resolvable:$true] %s39
      %45 = dma.hbm_to_vmem [thread:$0]  %s1, 4096, %s40, [#allocation6], 64, 64, 4
    $region9: #{medium_classifier.1} parent=1 // pred_fallthru
      _
    // Predicated region
    $region10: #{medium_classifier.1} parent=1 // pred_check
      _
    $region11: #{medium_classifier.1} parent=1 // pred_check_branch
      %47 = sbr.rel (0) target = $region13
    $region12: #{medium_classifier.1} parent=1 // pred_region
      _
    $region13: #{medium_classifier.1} parent=1 // pred_fallthru
      _
    // Predicated region
    $region14: #{medium_classifier.1} parent=1 // pred_check
      _
    $region15: #{medium_classifier.1} parent=1 // pred_check_branch
      %49 = sbr.rel (0) target = $region17
    $region16: #{medium_classifier.1} parent=1 // pred_region
      _
    $region17: #{medium_classifier.1} parent=1 // pred_fallthru
      _
    // Predicated region
    $region18: #{medium_classifier.1} parent=1 // pred_check
      _
    $region19: #{medium_classifier.1} parent=1 // pred_check_branch
      %51 = sbr.rel (0) target = $region21
    $region20: #{medium_classifier.1} parent=1 // pred_region
      _
    $region21: #{medium_classifier.1} parent=1 // pred_fallthru
      _
    // Predicated region
    $region22: #{medium_classifier.1} parent=1 // pred_check
      _
    $region23: #{medium_classifier.1} parent=1 // pred_check_branch
      %53 = sbr.rel (0) target = $region25
    $region24: #{medium_classifier.1} parent=1 // pred_region
      %s55 = ssub.s32 4096, 4096
      %56 = vsyncadd [#allocation6], %s55
      %s57 = sshll.u32 [#allocation7], 4
      %s58 = int_to_ptr.vmem [resolvable:$true] %s57
      %63 = dma.hbm_to_vmem [thread:$0]  %s5, 4096, %s58, [#allocation6], 64, 64, 4
    $region25: #{medium_classifier.1} parent=1 // pred_fallthru
      _
    // Predicated region
    $region26: #{medium_classifier.1} parent=1 // pred_check
      _
    $region27: #{medium_classifier.1} parent=1 // pred_check_branch
      %65 = sbr.rel (0) target = $region29
    $region28: #{medium_classifier.1} parent=1 // pred_region
      %s67 = ssub.s32 64, 64
      %68 = vsyncadd [#allocation9], %s67
      %s69 = sshll.u32 [#allocation8], 4
      %s70 = int_to_ptr.vmem [resolvable:$true] %s69
      %75 = dma.hbm_to_vmem [thread:$0]  %s6, 64, %s70, [#allocation9], 16, 16, 1
    $region29: #{medium_classifier.1} parent=1 // pred_fallthru
      _
    // Predicated region
    $region30: #{medium_classifier.1} parent=1 // pred_check
      _
    $region31: #{medium_classifier.1} parent=1 // pred_check_branch
      %77 = sbr.rel (0) target = $region33
    $region32: #{medium_classifier.1} parent=1 // pred_region
      %s79 = ssub.s32 4096, 4096
      %80 = vsyncadd [#allocation9], %s79
      %s81 = sshll.u32 [#allocation10], 4
      %s82 = int_to_ptr.vmem [resolvable:$true] %s81
      %87 = dma.hbm_to_vmem [thread:$0]  %s7, 4096, %s82, [#allocation9], 64, 64, 4
    $region33: #{medium_classifier.1} parent=1 // pred_fallthru
      _
    // Predicated region
    $region34: #{medium_classifier.1} parent=1 // pred_check
      _
    $region35: #{medium_classifier.1} parent=1 // pred_check_branch
      %89 = sbr.rel (0) target = $region37
    $region36: #{medium_classifier.1} parent=1 // pred_region
      %s91 = ssub.s32 64, 64
      %92 = vsyncadd [#allocation12], %s91
      %s93 = sshll.u32 [#allocation11], 4
      %s94 = int_to_ptr.vmem [resolvable:$true] %s93
      %99 = dma.hbm_to_vmem [thread:$0]  %s8, 64, %s94, [#allocation12], 16, 16, 1
    $region37: #{medium_classifier.1} parent=1 // pred_fallthru
      _
    // Predicated region
    $region38: #{medium_classifier.1} parent=1 // pred_check
      _
    $region39: #{medium_classifier.1} parent=1 // pred_check_branch
      %101 = sbr.rel (0) target = $region41
    $region40: #{medium_classifier.1} parent=1 // pred_region
      _
    $region41: #{medium_classifier.1} parent=1 // pred_fallthru
      _
    // Predicated region
    $region42: #{medium_classifier.1} parent=1 // pred_check
      _
    $region43: #{medium_classifier.1} parent=1 // pred_check_branch
      %103 = sbr.rel (0) target = $region45
    $region44: #{medium_classifier.1} parent=1 // pred_region
      %s105 = ssub.s32 64, 64
      %106 = vsyncadd [#allocation12], %s105
      %s107 = sshll.u32 [#allocation13], 4
      %s108 = int_to_ptr.vmem [resolvable:$true] %s107
      %113 = dma.hbm_to_vmem [thread:$0]  %s10, 64, %s108, [#allocation12], 16, 16, 1
    $region45: #{medium_classifier.1} parent=1 // pred_fallthru
      _
    // Predicated region
    $region46: #{medium_classifier.1} parent=1 // pred_check
      _
    $region47: #{medium_classifier.1} parent=1 // pred_check_branch
      %115 = sbr.rel (0) target = $region49
    $region48: #{medium_classifier.1} parent=1 // pred_region
      %s117 = ssub.s32 1024, 1024
      %118 = vsyncadd [#allocation15], %s117
      %s119 = sshll.u32 [#allocation14], 4
      %s120 = int_to_ptr.vmem [resolvable:$true] %s119
      %125 = dma.hbm_to_vmem [thread:$0]  %s11, 1024, %s120, [#allocation15], 64, 64, 4
    $region49: #{medium_classifier.1} parent=1 // pred_fallthru
      _
    // Predicated region
    $region50: #{medium_classifier.1} parent=1 // pred_check
      _
    $region51: #{medium_classifier.1} parent=1 // pred_check_branch
      %127 = sbr.rel (0) target = $region53
    $region52: #{medium_classifier.1} parent=1 // pred_region
      _
    $region53: #{medium_classifier.1} parent=1 // pred_fallthru
      _
    // Predicated region
    $region54: #{medium_classifier.1} parent=1 // pred_check
      _
    $region55: #{medium_classifier.1} parent=1 // pred_check_branch
      %129 = sbr.rel (0) target = $region57
    $region56: #{medium_classifier.1} parent=1 // pred_region
      %130 = dma.done [#allocation3], 128
    $region57: #{medium_classifier.1} parent=1 // pred_fallthru
      _
    // Predicated region
    $region58: #{medium_classifier.1} parent=1 // pred_check
      _
    $region59: #{medium_classifier.1} parent=1 // pred_check_branch
      %132 = sbr.rel (0) target = $region61
    $region60: #{medium_classifier.1} parent=1 // pred_region
      %133 = dma.done [#allocation6], 4096
    $region61: #{medium_classifier.1} parent=1 // pred_fallthru
      _
    // Predicated region
    $region62: #{medium_classifier.1} parent=1 // pred_check
      _
    $region63: #{medium_classifier.1} parent=1 // pred_check_branch
      %135 = sbr.rel (0) target = $region65
    $region64: #{medium_classifier.1} parent=1 // pred_region
      %136 = dma.done [#allocation6], 4096
    $region65: #{medium_classifier.1} parent=1 // pred_fallthru
      _
    // Predicated region
    $region66: #{medium_classifier.1} parent=1 // pred_check
      _
    $region67: #{medium_classifier.1} parent=1 // pred_check_branch
      %138 = sbr.rel (0) target = $region69
    $region68: #{medium_classifier.1} parent=1 // pred_region
      %139 = dma.done [#allocation9], 64
    $region69: #{medium_classifier.1} parent=1 // pred_fallthru
      _
    // Predicated region
    $region70: #{medium_classifier.1} parent=1 // pred_check
      _
    $region71: #{medium_classifier.1} parent=1 // pred_check_branch
      %141 = sbr.rel (0) target = $region73
    $region72: #{medium_classifier.1} parent=1 // pred_region
      %142 = dma.done [#allocation9], 4096
    $region73: #{medium_classifier.1} parent=1 // pred_fallthru
      _
    // Predicated region
    $region74: #{medium_classifier.1} parent=1 // pred_check
      _
    $region75: #{medium_classifier.1} parent=1 // pred_check_branch
      %144 = sbr.rel (0) target = $region77
    $region76: #{medium_classifier.1} parent=1 // pred_region
      %145 = dma.done [#allocation12], 64
    $region77: #{medium_classifier.1} parent=1 // pred_fallthru
      _
    // Predicated region
    $region78: #{medium_classifier.1} parent=1 // pred_check
      _
    $region79: #{medium_classifier.1} parent=1 // pred_check_branch
      %147 = sbr.rel (0) target = $region81
    $region80: #{medium_classifier.1} parent=1 // pred_region
      %148 = dma.done [#allocation12], 64
    $region81: #{medium_classifier.1} parent=1 // pred_fallthru
      _
    // Predicated region
    $region82: #{medium_classifier.1} parent=1 // pred_check
      _
    $region83: #{medium_classifier.1} parent=1 // pred_check_branch
      %150 = sbr.rel (0) target = $region85
    $region84: #{medium_classifier.1} parent=1 // pred_region
      %151 = dma.done [#allocation15], 1024
    $region85: #{medium_classifier.1} parent=1 // pred_fallthru
      _
    %v153 = vld [vmem:[#allocation2] sm:$0xff]
    %v154 = vpack.c.bf16 %v153, %v153
    %v155 = vld [vmem:[#allocation5] sm:$0xf]
    %v156 = vld [vmem:[#allocation5 + $0x4] sm:$0xf]
    %v157 = vld [vmem:[#allocation5 + $0x8] sm:$0xf]
    %v158 = vld [vmem:[#allocation5 + $0xc] sm:$0xf]
    %v159 = vld [vmem:[#allocation5 + $0x10] sm:$0xf]
    %v160 = vld [vmem:[#allocation5 + $0x14] sm:$0xf]
    %v161 = vld [vmem:[#allocation5 + $0x18] sm:$0xf]
    %v162 = vld [vmem:[#allocation5 + $0x1c] sm:$0xf]
    %v163 = vld [vmem:[#allocation5 + $0x20] sm:$0xf]
    %v164 = vld [vmem:[#allocation5 + $0x24] sm:$0xf]
    %v165 = vld [vmem:[#allocation5 + $0x28] sm:$0xf]
    %v166 = vld [vmem:[#allocation5 + $0x2c] sm:$0xf]
    %v167 = vld [vmem:[#allocation5 + $0x30] sm:$0xf]
    %v168 = vld [vmem:[#allocation5 + $0x34] sm:$0xf]
    %v169 = vld [vmem:[#allocation5 + $0x38] sm:$0xf]
    %v170 = vld [vmem:[#allocation5 + $0x3c] sm:$0xf]
    %v171 = vld [vmem:[%s2] sm:$0x1]
    %v173 = vlaneseq
    %v174 = vshrl.u32 %v173, 7
    %v175 = vsub.s32 0, %v174
    %v176 = vrot.slane %v171, %v175
    %v194 = vunpack.c.l.b16 %v155
    %v195 = vunpack.c.l.b16 %v156
    %v196 = vunpack.c.l.b16 %v157
    %v197 = vunpack.c.l.b16 %v158
    %v198 = vunpack.c.l.b16 %v159
    %v199 = vunpack.c.l.b16 %v160
    %v200 = vunpack.c.l.b16 %v161
    %v201 = vunpack.c.l.b16 %v162
    %v202 = vunpack.c.l.b16 %v163
    %v203 = vunpack.c.l.b16 %v164
    %v204 = vunpack.c.l.b16 %v165
    %v205 = vunpack.c.l.b16 %v166
    %v206 = vunpack.c.l.b16 %v167
    %v207 = vunpack.c.l.b16 %v168
    %v208 = vunpack.c.l.b16 %v169
    %v209 = vunpack.c.l.b16 %v170
    %v210 = vpack.c.b16 %v195, %v194
    %v211 = vpack.c.b16 %v197, %v196
    %v212 = vpack.c.b16 %v199, %v198
    %v213 = vpack.c.b16 %v201, %v200
    %v214 = vpack.c.b16 %v203, %v202
    %v215 = vpack.c.b16 %v205, %v204
    %v216 = vpack.c.b16 %v207, %v206
    %v217 = vpack.c.b16 %v209, %v208
    %226 = vmatprep.subr.bf16.mxu0 0
    %227 = vmatpush1.bf16.msra.mxu0 %v210
    %228 = vmatprep.subr.bf16.mxu0 0
    %229 = vmatpush1.bf16.msra.mxu0 %v211
    %230 = vmatprep.subr.bf16.mxu0 0
    %231 = vmatpush1.bf16.msra.mxu0 %v212
    %232 = vmatprep.subr.bf16.mxu0 0
    %233 = vmatpush1.bf16.msra.mxu0 %v213
    %234 = vmatprep.subr.bf16.mxu0 0
    %235 = vmatpush1.bf16.msra.mxu0 %v214
    %236 = vmatprep.subr.bf16.mxu0 0
    %237 = vmatpush1.bf16.msra.mxu0 %v215
    %238 = vmatprep.subr.bf16.mxu0 0
    %239 = vmatpush1.bf16.msra.mxu0 %v216
    %240 = vmatprep.subr.bf16.mxu0 0
    %241 = vmatpush1.bf16.msra.mxu0 %v217
    %242 = vmatprep.subr.bf16.mxu0 0
    %243 = vmatpush1.bf16.msra.mxu0 0
    %244 = vmatprep.subr.bf16.mxu0 0
    %245 = vmatpush1.bf16.msra.mxu0 0
    %246 = vmatprep.subr.bf16.mxu0 0
    %247 = vmatpush1.bf16.msra.mxu0 0
    %248 = vmatprep.subr.bf16.mxu0 0
    %249 = vmatpush1.bf16.msra.mxu0 0
    %250 = vmatprep.subr.bf16.mxu0 0
    %251 = vmatpush1.bf16.msra.mxu0 0
    %252 = vmatprep.subr.bf16.mxu0 0
    %253 = vmatpush1.bf16.msra.mxu0 0
    %254 = vmatprep.subr.bf16.mxu0 0
    %255 = vmatpush1.bf16.msra.mxu0 0
    %256 = vmatprep.subr.bf16.mxu0 0
    %257 = vmatpush1.bf16.msra.mxu0 0
    %258 = vmatprep.mubr.bf16.mxu0 0
    %259 = vmatmul.mubr.bf16.gmra.mrb[0].mxu0 %v154
    %v260 = vpop.f32.mrb[0].mxu0
    %v261 = vadd.f32 %v176, %v260
    %v262 = vpop.f32.mrb[0].mxu0
    %v263 = vpop.f32.mrb[0].mxu0
    %v264 = vpop.f32.mrb[0].mxu0
    %265 = vdwg.mxu0
    %v266 = vld [vmem:[%s3] sm:$0x1]
    %v267 = vld [vmem:[%s4] sm:$0x1]
    %268 = vadd.xlane.f32.xlu0 %v261
    %v269 = vpop.xlane.xlu0 %268
    %v270 = vrcp.pop 128.0
    %v271 = vmul.f32 %v269, %v270
    %v272 = vmul.f32 %v261, %v261
    %273 = vadd.xlane.f32.xlu0 %v272
    %v274 = vpop.xlane.xlu0 %273
    %v275 = vmul.f32 %v274, %v270
    %v276 = vmul.f32 %v271, %v271
    %v277 = vsub.f32 %v275, %v276
    %v278 = vmax.f32 %v277, 0.0
    %v279 = vsub.f32 %v261, %v271
    %v280 = vadd.f32 %v278, 1e-05
    %v281 = vrsqrt.pop %v280
    %v282 = vmul.f32 %v279, %v281
    %v284 = vlaneseq
    %v285 = vshrl.u32 %v284, 7
    %v286 = vsub.s32 0, %v285
    %v287 = vrot.slane %v266, %v286
    %v289 = vmul.f32 %v282, %v287
    %v291 = vlaneseq
    %v292 = vshrl.u32 %v291, 7
    %v293 = vsub.s32 0, %v292
    %v294 = vrot.slane %v267, %v293
    %v296 = vadd.f32 %v289, %v294
    %v297 = vpack.c.bf16 %v296, %v296
    %v298 = vld [vmem:[#allocation7] sm:$0xf]
    %v299 = vld [vmem:[#allocation7 + $0x4] sm:$0xf]
    %v300 = vld [vmem:[#allocation7 + $0x8] sm:$0xf]
    %v301 = vld [vmem:[#allocation7 + $0xc] sm:$0xf]
    %v302 = vld [vmem:[#allocation7 + $0x10] sm:$0xf]
    %v303 = vld [vmem:[#allocation7 + $0x14] sm:$0xf]
    %v304 = vld [vmem:[#allocation7 + $0x18] sm:$0xf]
    %v305 = vld [vmem:[#allocation7 + $0x1c] sm:$0xf]
    %v306 = vld [vmem:[#allocation7 + $0x20] sm:$0xf]
    %v307 = vld [vmem:[#allocation7 + $0x24] sm:$0xf]
    %v308 = vld [vmem:[#allocation7 + $0x28] sm:$0xf]
    %v309 = vld [vmem:[#allocation7 + $0x2c] sm:$0xf]
    %v310 = vld [vmem:[#allocation7 + $0x30] sm:$0xf]
    %v311 = vld [vmem:[#allocation7 + $0x34] sm:$0xf]
    %v312 = vld [vmem:[#allocation7 + $0x38] sm:$0xf]
    %v313 = vld [vmem:[#allocation7 + $0x3c] sm:$0xf]
    %v314 = vld [vmem:[#allocation8] sm:$0x1]
    %v316 = vlaneseq
    %v317 = vshrl.u32 %v316, 7
    %v318 = vsub.s32 0, %v317
    %v319 = vrot.slane %v314, %v318
    %v337 = vunpack.c.l.b16 %v298
    %v338 = vunpack.c.l.b16 %v299
    %v339 = vunpack.c.l.b16 %v300
    %v340 = vunpack.c.l.b16 %v301
    %v341 = vunpack.c.l.b16 %v302
    %v342 = vunpack.c.l.b16 %v303
    %v343 = vunpack.c.l.b16 %v304
    %v344 = vunpack.c.l.b16 %v305
    %v345 = vunpack.c.l.b16 %v306
    %v346 = vunpack.c.l.b16 %v307
    %v347 = vunpack.c.l.b16 %v308
    %v348 = vunpack.c.l.b16 %v309
    %v349 = vunpack.c.l.b16 %v310
    %v350 = vunpack.c.l.b16 %v311
    %v351 = vunpack.c.l.b16 %v312
    %v352 = vunpack.c.l.b16 %v313
    %v353 = vpack.c.b16 %v338, %v337
    %v354 = vpack.c.b16 %v340, %v339
    %v355 = vpack.c.b16 %v342, %v341
    %v356 = vpack.c.b16 %v344, %v343
    %v357 = vpack.c.b16 %v346, %v345
    %v358 = vpack.c.b16 %v348, %v347
    %v359 = vpack.c.b16 %v350, %v349
    %v360 = vpack.c.b16 %v352, %v351
    %369 = vmatprep.subr.bf16.mxu0 0
    %370 = vmatpush1.bf16.msra.mxu0 %v353
    %371 = vmatprep.subr.bf16.mxu0 0
    %372 = vmatpush1.bf16.msra.mxu0 %v354
    %373 = vmatprep.subr.bf16.mxu0 0
    %374 = vmatpush1.bf16.msra.mxu0 %v355
    %375 = vmatprep.subr.bf16.mxu0 0
    %376 = vmatpush1.bf16.msra.mxu0 %v356
    %377 = vmatprep.subr.bf16.mxu0 0
    %378 = vmatpush1.bf16.msra.mxu0 %v357
    %379 = vmatprep.subr.bf16.mxu0 0
    %380 = vmatpush1.bf16.msra.mxu0 %v358
    %381 = vmatprep.subr.bf16.mxu0 0
    %382 = vmatpush1.bf16.msra.mxu0 %v359
    %383 = vmatprep.subr.bf16.mxu0 0
    %384 = vmatpush1.bf16.msra.mxu0 %v360
    %385 = vmatprep.subr.bf16.mxu0 0
    %386 = vmatpush1.bf16.msra.mxu0 0
    %387 = vmatprep.subr.bf16.mxu0 0
    %388 = vmatpush1.bf16.msra.mxu0 0
    %389 = vmatprep.subr.bf16.mxu0 0
    %390 = vmatpush1.bf16.msra.mxu0 0
    %391 = vmatprep.subr.bf16.mxu0 0
    %392 = vmatpush1.bf16.msra.mxu0 0
    %393 = vmatprep.subr.bf16.mxu0 0
    %394 = vmatpush1.bf16.msra.mxu0 0
    %395 = vmatprep.subr.bf16.mxu0 0
    %396 = vmatpush1.bf16.msra.mxu0 0
    %397 = vmatprep.subr.bf16.mxu0 0
    %398 = vmatpush1.bf16.msra.mxu0 0
    %399 = vmatprep.subr.bf16.mxu0 0
    %400 = vmatpush1.bf16.msra.mxu0 0
    %401 = vmatprep.mubr.bf16.mxu0 0
    %402 = vmatmul.mubr.bf16.gmra.mrb[0].mxu0 %v297
    %v403 = vpop.f32.mrb[0].mxu0
    %v404 = vadd.f32 %v319, %v403
    %v405 = vpop.f32.mrb[0].mxu0
    %v406 = vpop.f32.mrb[0].mxu0
    %v407 = vpop.f32.mrb[0].mxu0
    %408 = vdwg.mxu0
    %v409 = vmax.f32 %v404, 0.0
    %v410 = vpack.c.bf16 %v409, %v409
    %v411 = vld [vmem:[#allocation10] sm:$0xf]
    %v412 = vld [vmem:[#allocation10 + $0x4] sm:$0xf]
    %v413 = vld [vmem:[#allocation10 + $0x8] sm:$0xf]
    %v414 = vld [vmem:[#allocation10 + $0xc] sm:$0xf]
    %v415 = vld [vmem:[#allocation10 + $0x10] sm:$0xf]
    %v416 = vld [vmem:[#allocation10 + $0x14] sm:$0xf]
    %v417 = vld [vmem:[#allocation10 + $0x18] sm:$0xf]
    %v418 = vld [vmem:[#allocation10 + $0x1c] sm:$0xf]
    %v419 = vld [vmem:[#allocation10 + $0x20] sm:$0xf]
    %v420 = vld [vmem:[#allocation10 + $0x24] sm:$0xf]
    %v421 = vld [vmem:[#allocation10 + $0x28] sm:$0xf]
    %v422 = vld [vmem:[#allocation10 + $0x2c] sm:$0xf]
    %v423 = vld [vmem:[#allocation10 + $0x30] sm:$0xf]
    %v424 = vld [vmem:[#allocation10 + $0x34] sm:$0xf]
    %v425 = vld [vmem:[#allocation10 + $0x38] sm:$0xf]
    %v426 = vld [vmem:[#allocation10 + $0x3c] sm:$0xf]
    %v443 = vunpack.c.l.b16 %v411
    %v444 = vunpack.c.l.b16 %v412
    %v445 = vunpack.c.l.b16 %v413
    %v446 = vunpack.c.l.b16 %v414
    %v447 = vunpack.c.l.b16 %v415
    %v448 = vunpack.c.l.b16 %v416
    %v449 = vunpack.c.l.b16 %v417
    %v450 = vunpack.c.l.b16 %v418
    %v451 = vunpack.c.l.b16 %v419
    %v452 = vunpack.c.l.b16 %v420
    %v453 = vunpack.c.l.b16 %v421
    %v454 = vunpack.c.l.b16 %v422
    %v455 = vunpack.c.l.b16 %v423
    %v456 = vunpack.c.l.b16 %v424
    %v457 = vunpack.c.l.b16 %v425
    %v458 = vunpack.c.l.b16 %v426
    %v459 = vpack.c.b16 %v444, %v443
    %v460 = vpack.c.b16 %v446, %v445
    %v461 = vpack.c.b16 %v448, %v447
    %v462 = vpack.c.b16 %v450, %v449
    %v463 = vpack.c.b16 %v452, %v451
    %v464 = vpack.c.b16 %v454, %v453
    %v465 = vpack.c.b16 %v456, %v455
    %v466 = vpack.c.b16 %v458, %v457
    %475 = vmatprep.subr.bf16.mxu0 0
    %476 = vmatpush1.bf16.msra.mxu0 %v459
    %477 = vmatprep.subr.bf16.mxu0 0
    %478 = vmatpush1.bf16.msra.mxu0 %v460
    %479 = vmatprep.subr.bf16.mxu0 0
    %480 = vmatpush1.bf16.msra.mxu0 %v461
    %481 = vmatprep.subr.bf16.mxu0 0
    %482 = vmatpush1.bf16.msra.mxu0 %v462
    %483 = vmatprep.subr.bf16.mxu0 0
    %484 = vmatpush1.bf16.msra.mxu0 %v463
    %485 = vmatprep.subr.bf16.mxu0 0
    %486 = vmatpush1.bf16.msra.mxu0 %v464
    %487 = vmatprep.subr.bf16.mxu0 0
    %488 = vmatpush1.bf16.msra.mxu0 %v465
    %489 = vmatprep.subr.bf16.mxu0 0
    %490 = vmatpush1.bf16.msra.mxu0 %v466
    %491 = vmatprep.subr.bf16.mxu0 0
    %492 = vmatpush1.bf16.msra.mxu0 0
    %493 = vmatprep.subr.bf16.mxu0 0
    %494 = vmatpush1.bf16.msra.mxu0 0
    %495 = vmatprep.subr.bf16.mxu0 0
    %496 = vmatpush1.bf16.msra.mxu0 0
    %497 = vmatprep.subr.bf16.mxu0 0
    %498 = vmatpush1.bf16.msra.mxu0 0
    %499 = vmatprep.subr.bf16.mxu0 0
    %500 = vmatpush1.bf16.msra.mxu0 0
    %501 = vmatprep.subr.bf16.mxu0 0
    %502 = vmatpush1.bf16.msra.mxu0 0
    %503 = vmatprep.subr.bf16.mxu0 0
    %504 = vmatpush1.bf16.msra.mxu0 0
    %505 = vmatprep.subr.bf16.mxu0 0
    %506 = vmatpush1.bf16.msra.mxu0 0
    %507 = vmatprep.mubr.bf16.mxu0 0
    %508 = vmatmul.mubr.bf16.gmra.mrb[0].mxu0 %v410
    %v509 = vpop.f32.mrb[0].mxu0
    %v510 = vadd.f32 0.0, %v509
    %v511 = vpop.f32.mrb[0].mxu0
    %v512 = vpop.f32.mrb[0].mxu0
    %v513 = vpop.f32.mrb[0].mxu0
    %514 = vdwg.mxu0
    %v515 = vadd.f32 %v296, %v510
    %v516 = vld [vmem:[#allocation11] sm:$0x1]
    %v518 = vlaneseq
    %v519 = vshrl.u32 %v518, 7
    %v520 = vsub.s32 0, %v519
    %v521 = vrot.slane %v516, %v520
    %v523 = vadd.f32 %v515, %v521
    %v524 = vld [vmem:[%s9] sm:$0x1]
    %v525 = vld [vmem:[#allocation13] sm:$0x1]
    %526 = vadd.xlane.f32.xlu0 %v523
    %v527 = vpop.xlane.xlu0 %526
    %v528 = vmul.f32 %v527, %v270
    %v529 = vmul.f32 %v523, %v523
    %530 = vadd.xlane.f32.xlu0 %v529
    %v531 = vpop.xlane.xlu0 %530
    %v532 = vmul.f32 %v531, %v270
    %v533 = vmul.f32 %v528, %v528
    %v534 = vsub.f32 %v532, %v533
    %v535 = vmax.f32 %v534, 0.0
    %v536 = vsub.f32 %v523, %v528
    %v537 = vadd.f32 %v535, 1e-05
    %v538 = vrsqrt.pop %v537
    %v539 = vmul.f32 %v536, %v538
    %v541 = vlaneseq
    %v542 = vshrl.u32 %v541, 7
    %v543 = vsub.s32 0, %v542
    %v544 = vrot.slane %v524, %v543
    %v546 = vmul.f32 %v539, %v544
    %v548 = vlaneseq
    %v549 = vshrl.u32 %v548, 7
    %v550 = vsub.s32 0, %v549
    %v551 = vrot.slane %v525, %v550
    %v553 = vadd.f32 %v546, %v551
    %v554 = vpack.c.bf16 %v553, %v553
    %s555 = scalar_lea.vmem [#allocation5], 64
    %v556 = vld [vmem:[%s555] sm:$0xf]
    %v557 = vld [vmem:[%s555 + $0x4] sm:$0xf]
    %v558 = vld [vmem:[%s555 + $0x8] sm:$0xf]
    %v559 = vld [vmem:[%s555 + $0xc] sm:$0xf]
    %v560 = vld [vmem:[%s555 + $0x10] sm:$0xf]
    %v561 = vld [vmem:[%s555 + $0x14] sm:$0xf]
    %v562 = vld [vmem:[%s555 + $0x18] sm:$0xf]
    %v563 = vld [vmem:[%s555 + $0x1c] sm:$0xf]
    %v564 = vld [vmem:[%s555 + $0x20] sm:$0xf]
    %v565 = vld [vmem:[%s555 + $0x24] sm:$0xf]
    %v566 = vld [vmem:[%s555 + $0x28] sm:$0xf]
    %v567 = vld [vmem:[%s555 + $0x2c] sm:$0xf]
    %v568 = vld [vmem:[%s555 + $0x30] sm:$0xf]
    %v569 = vld [vmem:[%s555 + $0x34] sm:$0xf]
    %v570 = vld [vmem:[%s555 + $0x38] sm:$0xf]
    %v571 = vld [vmem:[%s555 + $0x3c] sm:$0xf]
    %s572 = scalar_lea.vmem %s2, 1
    %v573 = vld [vmem:[%s572] sm:$0x1]
    %v575 = vlaneseq
    %v576 = vshrl.u32 %v575, 7
    %v577 = vsub.s32 0, %v576
    %v578 = vrot.slane %v573, %v577
    %v596 = vunpack.c.l.b16 %v556
    %v597 = vunpack.c.l.b16 %v557
    %v598 = vunpack.c.l.b16 %v558
    %v599 = vunpack.c.l.b16 %v559
    %v600 = vunpack.c.l.b16 %v560
    %v601 = vunpack.c.l.b16 %v561
    %v602 = vunpack.c.l.b16 %v562
    %v603 = vunpack.c.l.b16 %v563
    %v604 = vunpack.c.l.b16 %v564
    %v605 = vunpack.c.l.b16 %v565
    %v606 = vunpack.c.l.b16 %v566
    %v607 = vunpack.c.l.b16 %v567
    %v608 = vunpack.c.l.b16 %v568
    %v609 = vunpack.c.l.b16 %v569
    %v610 = vunpack.c.l.b16 %v570
    %v611 = vunpack.c.l.b16 %v571
    %v612 = vpack.c.b16 %v597, %v596
    %v613 = vpack.c.b16 %v599, %v598
    %v614 = vpack.c.b16 %v601, %v600
    %v615 = vpack.c.b16 %v603, %v602
    %v616 = vpack.c.b16 %v605, %v604
    %v617 = vpack.c.b16 %v607, %v606
    %v618 = vpack.c.b16 %v609, %v608
    %v619 = vpack.c.b16 %v611, %v610
    %628 = vmatprep.subr.bf16.mxu0 0
    %629 = vmatpush1.bf16.msra.mxu0 %v612
    %630 = vmatprep.subr.bf16.mxu0 0
    %631 = vmatpush1.bf16.msra.mxu0 %v613
    %632 = vmatprep.subr.bf16.mxu0 0
    %633 = vmatpush1.bf16.msra.mxu0 %v614
    %634 = vmatprep.subr.bf16.mxu0 0
    %635 = vmatpush1.bf16.msra.mxu0 %v615
    %636 = vmatprep.subr.bf16.mxu0 0
    %637 = vmatpush1.bf16.msra.mxu0 %v616
    %638 = vmatprep.subr.bf16.mxu0 0
    %639 = vmatpush1.bf16.msra.mxu0 %v617
    %640 = vmatprep.subr.bf16.mxu0 0
    %641 = vmatpush1.bf16.msra.mxu0 %v618
    %642 = vmatprep.subr.bf16.mxu0 0
    %643 = vmatpush1.bf16.msra.mxu0 %v619
    %644 = vmatprep.subr.bf16.mxu0 0
    %645 = vmatpush1.bf16.msra.mxu0 0
    %646 = vmatprep.subr.bf16.mxu0 0
    %647 = vmatpush1.bf16.msra.mxu0 0
    %648 = vmatprep.subr.bf16.mxu0 0
    %649 = vmatpush1.bf16.msra.mxu0 0
    %650 = vmatprep.subr.bf16.mxu0 0
    %651 = vmatpush1.bf16.msra.mxu0 0
    %652 = vmatprep.subr.bf16.mxu0 0
    %653 = vmatpush1.bf16.msra.mxu0 0
    %654 = vmatprep.subr.bf16.mxu0 0
    %655 = vmatpush1.bf16.msra.mxu0 0
    %656 = vmatprep.subr.bf16.mxu0 0
    %657 = vmatpush1.bf16.msra.mxu0 0
    %658 = vmatprep.subr.bf16.mxu0 0
    %659 = vmatpush1.bf16.msra.mxu0 0
    %660 = vmatprep.mubr.bf16.mxu0 0
    %661 = vmatmul.mubr.bf16.gmra.mrb[0].mxu0 %v554
    %v662 = vpop.f32.mrb[0].mxu0
    %v663 = vadd.f32 %v578, %v662
    %v664 = vpop.f32.mrb[0].mxu0
    %v665 = vpop.f32.mrb[0].mxu0
    %v666 = vpop.f32.mrb[0].mxu0
    %667 = vdwg.mxu0
    %s668 = scalar_lea.vmem %s3, 1
    %v669 = vld [vmem:[%s668] sm:$0x1]
    %s670 = scalar_lea.vmem %s4, 1
    %v671 = vld [vmem:[%s670] sm:$0x1]
    %672 = vadd.xlane.f32.xlu0 %v663
    %v673 = vpop.xlane.xlu0 %672
    %v674 = vmul.f32 %v673, %v270
    %v675 = vmul.f32 %v663, %v663
    %676 = vadd.xlane.f32.xlu0 %v675
    %v677 = vpop.xlane.xlu0 %676
    %v678 = vmul.f32 %v677, %v270
    %v679 = vmul.f32 %v674, %v674
    %v680 = vsub.f32 %v678, %v679
    %v681 = vmax.f32 %v680, 0.0
    %v682 = vsub.f32 %v663, %v674
    %v683 = vadd.f32 %v681, 1e-05
    %v684 = vrsqrt.pop %v683
    %v685 = vmul.f32 %v682, %v684
    %v687 = vlaneseq
    %v688 = vshrl.u32 %v687, 7
    %v689 = vsub.s32 0, %v688
    %v690 = vrot.slane %v669, %v689
    %v692 = vmul.f32 %v685, %v690
    %v694 = vlaneseq
    %v695 = vshrl.u32 %v694, 7
    %v696 = vsub.s32 0, %v695
    %v697 = vrot.slane %v671, %v696
    %v699 = vadd.f32 %v692, %v697
    %v700 = vpack.c.bf16 %v699, %v699
    %s701 = scalar_lea.vmem [#allocation7], 64
    %v702 = vld [vmem:[%s701] sm:$0xf]
    %v703 = vld [vmem:[%s701 + $0x4] sm:$0xf]
    %v704 = vld [vmem:[%s701 + $0x8] sm:$0xf]
    %v705 = vld [vmem:[%s701 + $0xc] sm:$0xf]
    %v706 = vld [vmem:[%s701 + $0x10] sm:$0xf]
    %v707 = vld [vmem:[%s701 + $0x14] sm:$0xf]
    %v708 = vld [vmem:[%s701 + $0x18] sm:$0xf]
    %v709 = vld [vmem:[%s701 + $0x1c] sm:$0xf]
    %v710 = vld [vmem:[%s701 + $0x20] sm:$0xf]
    %v711 = vld [vmem:[%s701 + $0x24] sm:$0xf]
    %v712 = vld [vmem:[%s701 + $0x28] sm:$0xf]
    %v713 = vld [vmem:[%s701 + $0x2c] sm:$0xf]
    %v714 = vld [vmem:[%s701 + $0x30] sm:$0xf]
    %v715 = vld [vmem:[%s701 + $0x34] sm:$0xf]
    %v716 = vld [vmem:[%s701 + $0x38] sm:$0xf]
    %v717 = vld [vmem:[%s701 + $0x3c] sm:$0xf]
    %s718 = scalar_lea.vmem [#allocation8], 1
    %v719 = vld [vmem:[%s718] sm:$0x1]
    %v721 = vlaneseq
    %v722 = vshrl.u32 %v721, 7
    %v723 = vsub.s32 0, %v722
    %v724 = vrot.slane %v719, %v723
    %v742 = vunpack.c.l.b16 %v702
    %v743 = vunpack.c.l.b16 %v703
    %v744 = vunpack.c.l.b16 %v704
    %v745 = vunpack.c.l.b16 %v705
    %v746 = vunpack.c.l.b16 %v706
    %v747 = vunpack.c.l.b16 %v707
    %v748 = vunpack.c.l.b16 %v708
    %v749 = vunpack.c.l.b16 %v709
    %v750 = vunpack.c.l.b16 %v710
    %v751 = vunpack.c.l.b16 %v711
    %v752 = vunpack.c.l.b16 %v712
    %v753 = vunpack.c.l.b16 %v713
    %v754 = vunpack.c.l.b16 %v714
    %v755 = vunpack.c.l.b16 %v715
    %v756 = vunpack.c.l.b16 %v716
    %v757 = vunpack.c.l.b16 %v717
    %v758 = vpack.c.b16 %v743, %v742
    %v759 = vpack.c.b16 %v745, %v744
    %v760 = vpack.c.b16 %v747, %v746
    %v761 = vpack.c.b16 %v749, %v748
    %v762 = vpack.c.b16 %v751, %v750
    %v763 = vpack.c.b16 %v753, %v752
    %v764 = vpack.c.b16 %v755, %v754
    %v765 = vpack.c.b16 %v757, %v756
    %774 = vmatprep.subr.bf16.mxu0 0
    %775 = vmatpush1.bf16.msra.mxu0 %v758
    %776 = vmatprep.subr.bf16.mxu0 0
    %777 = vmatpush1.bf16.msra.mxu0 %v759
    %778 = vmatprep.subr.bf16.mxu0 0
    %779 = vmatpush1.bf16.msra.mxu0 %v760
    %780 = vmatprep.subr.bf16.mxu0 0
    %781 = vmatpush1.bf16.msra.mxu0 %v761
    %782 = vmatprep.subr.bf16.mxu0 0
    %783 = vmatpush1.bf16.msra.mxu0 %v762
    %784 = vmatprep.subr.bf16.mxu0 0
    %785 = vmatpush1.bf16.msra.mxu0 %v763
    %786 = vmatprep.subr.bf16.mxu0 0
    %787 = vmatpush1.bf16.msra.mxu0 %v764
    %788 = vmatprep.subr.bf16.mxu0 0
    %789 = vmatpush1.bf16.msra.mxu0 %v765
    %790 = vmatprep.subr.bf16.mxu0 0
    %791 = vmatpush1.bf16.msra.mxu0 0
    %792 = vmatprep.subr.bf16.mxu0 0
    %793 = vmatpush1.bf16.msra.mxu0 0
    %794 = vmatprep.subr.bf16.mxu0 0
    %795 = vmatpush1.bf16.msra.mxu0 0
    %796 = vmatprep.subr.bf16.mxu0 0
    %797 = vmatpush1.bf16.msra.mxu0 0
    %798 = vmatprep.subr.bf16.mxu0 0
    %799 = vmatpush1.bf16.msra.mxu0 0
    %800 = vmatprep.subr.bf16.mxu0 0
    %801 = vmatpush1.bf16.msra.mxu0 0
    %802 = vmatprep.subr.bf16.mxu0 0
    %803 = vmatpush1.bf16.msra.mxu0 0
    %804 = vmatprep.subr.bf16.mxu0 0
    %805 = vmatpush1.bf16.msra.mxu0 0
    %806 = vmatprep.mubr.bf16.mxu0 0
    %807 = vmatmul.mubr.bf16.gmra.mrb[0].mxu0 %v700
    %v808 = vpop.f32.mrb[0].mxu0
    %v809 = vadd.f32 %v724, %v808
    %v810 = vpop.f32.mrb[0].mxu0
    %v811 = vpop.f32.mrb[0].mxu0
    %v812 = vpop.f32.mrb[0].mxu0
    %813 = vdwg.mxu0
    %v814 = vmax.f32 %v809, 0.0
    %v815 = vpack.c.bf16 %v814, %v814
    %s816 = scalar_lea.vmem [#allocation10], 64
    %v817 = vld [vmem:[%s816] sm:$0xf]
    %v818 = vld [vmem:[%s816 + $0x4] sm:$0xf]
    %v819 = vld [vmem:[%s816 + $0x8] sm:$0xf]
    %v820 = vld [vmem:[%s816 + $0xc] sm:$0xf]
    %v821 = vld [vmem:[%s816 + $0x10] sm:$0xf]
    %v822 = vld [vmem:[%s816 + $0x14] sm:$0xf]
    %v823 = vld [vmem:[%s816 + $0x18] sm:$0xf]
    %v824 = vld [vmem:[%s816 + $0x1c] sm:$0xf]
    %v825 = vld [vmem:[%s816 + $0x20] sm:$0xf]
    %v826 = vld [vmem:[%s816 + $0x24] sm:$0xf]
    %v827 = vld [vmem:[%s816 + $0x28] sm:$0xf]
    %v828 = vld [vmem:[%s816 + $0x2c] sm:$0xf]
    %v829 = vld [vmem:[%s816 + $0x30] sm:$0xf]
    %v830 = vld [vmem:[%s816 + $0x34] sm:$0xf]
    %v831 = vld [vmem:[%s816 + $0x38] sm:$0xf]
    %v832 = vld [vmem:[%s816 + $0x3c] sm:$0xf]
    %v849 = vunpack.c.l.b16 %v817
    %v850 = vunpack.c.l.b16 %v818
    %v851 = vunpack.c.l.b16 %v819
    %v852 = vunpack.c.l.b16 %v820
    %v853 = vunpack.c.l.b16 %v821
    %v854 = vunpack.c.l.b16 %v822
    %v855 = vunpack.c.l.b16 %v823
    %v856 = vunpack.c.l.b16 %v824
    %v857 = vunpack.c.l.b16 %v825
    %v858 = vunpack.c.l.b16 %v826
    %v859 = vunpack.c.l.b16 %v827
    %v860 = vunpack.c.l.b16 %v828
    %v861 = vunpack.c.l.b16 %v829
    %v862 = vunpack.c.l.b16 %v830
    %v863 = vunpack.c.l.b16 %v831
    %v864 = vunpack.c.l.b16 %v832
    %v865 = vpack.c.b16 %v850, %v849
    %v866 = vpack.c.b16 %v852, %v851
    %v867 = vpack.c.b16 %v854, %v853
    %v868 = vpack.c.b16 %v856, %v855
    %v869 = vpack.c.b16 %v858, %v857
    %v870 = vpack.c.b16 %v860, %v859
    %v871 = vpack.c.b16 %v862, %v861
    %v872 = vpack.c.b16 %v864, %v863
    %881 = vmatprep.subr.bf16.mxu0 0
    %882 = vmatpush1.bf16.msra.mxu0 %v865
    %883 = vmatprep.subr.bf16.mxu0 0
    %884 = vmatpush1.bf16.msra.mxu0 %v866
    %885 = vmatprep.subr.bf16.mxu0 0
    %886 = vmatpush1.bf16.msra.mxu0 %v867
    %887 = vmatprep.subr.bf16.mxu0 0
    %888 = vmatpush1.bf16.msra.mxu0 %v868
    %889 = vmatprep.subr.bf16.mxu0 0
    %890 = vmatpush1.bf16.msra.mxu0 %v869
    %891 = vmatprep.subr.bf16.mxu0 0
    %892 = vmatpush1.bf16.msra.mxu0 %v870
    %893 = vmatprep.subr.bf16.mxu0 0
    %894 = vmatpush1.bf16.msra.mxu0 %v871
    %895 = vmatprep.subr.bf16.mxu0 0
    %896 = vmatpush1.bf16.msra.mxu0 %v872
    %897 = vmatprep.subr.bf16.mxu0 0
    %898 = vmatpush1.bf16.msra.mxu0 0
    %899 = vmatprep.subr.bf16.mxu0 0
    %900 = vmatpush1.bf16.msra.mxu0 0
    %901 = vmatprep.subr.bf16.mxu0 0
    %902 = vmatpush1.bf16.msra.mxu0 0
    %903 = vmatprep.subr.bf16.mxu0 0
    %904 = vmatpush1.bf16.msra.mxu0 0
    %905 = vmatprep.subr.bf16.mxu0 0
    %906 = vmatpush1.bf16.msra.mxu0 0
    %907 = vmatprep.subr.bf16.mxu0 0
    %908 = vmatpush1.bf16.msra.mxu0 0
    %909 = vmatprep.subr.bf16.mxu0 0
    %910 = vmatpush1.bf16.msra.mxu0 0
    %911 = vmatprep.subr.bf16.mxu0 0
    %912 = vmatpush1.bf16.msra.mxu0 0
    %913 = vmatprep.mubr.bf16.mxu0 0
    %914 = vmatmul.mubr.bf16.gmra.mrb[0].mxu0 %v815
    %v915 = vpop.f32.mrb[0].mxu0
    %v916 = vadd.f32 0.0, %v915
    %v917 = vpop.f32.mrb[0].mxu0
    %v918 = vpop.f32.mrb[0].mxu0
    %v919 = vpop.f32.mrb[0].mxu0
    %920 = vdwg.mxu0
    %v921 = vadd.f32 %v699, %v916
    %s922 = scalar_lea.vmem [#allocation11], 1
    %v923 = vld [vmem:[%s922] sm:$0x1]
    %v925 = vlaneseq
    %v926 = vshrl.u32 %v925, 7
    %v927 = vsub.s32 0, %v926
    %v928 = vrot.slane %v923, %v927
    %v930 = vadd.f32 %v921, %v928
    %s931 = scalar_lea.vmem %s9, 1
    %v932 = vld [vmem:[%s931] sm:$0x1]
    %s933 = scalar_lea.vmem [#allocation13], 1
    %v934 = vld [vmem:[%s933] sm:$0x1]
    %935 = vadd.xlane.f32.xlu0 %v930
    %v936 = vpop.xlane.xlu0 %935
    %v937 = vmul.f32 %v936, %v270
    %v938 = vmul.f32 %v930, %v930
    %939 = vadd.xlane.f32.xlu0 %v938
    %v940 = vpop.xlane.xlu0 %939
    %v941 = vmul.f32 %v940, %v270
    %v942 = vmul.f32 %v937, %v937
    %v943 = vsub.f32 %v941, %v942
    %v944 = vmax.f32 %v943, 0.0
    %v945 = vsub.f32 %v930, %v937
    %v946 = vadd.f32 %v944, 1e-05
    %v947 = vrsqrt.pop %v946
    %v948 = vmul.f32 %v945, %v947
    %v950 = vlaneseq
    %v951 = vshrl.u32 %v950, 7
    %v952 = vsub.s32 0, %v951
    %v953 = vrot.slane %v932, %v952
    %v955 = vmul.f32 %v948, %v953
    %v957 = vlaneseq
    %v958 = vshrl.u32 %v957, 7
    %v959 = vsub.s32 0, %v958
    %v960 = vrot.slane %v934, %v959
    %v962 = vadd.f32 %v955, %v960
    %v963 = vpack.c.bf16 %v962, %v962
    %s964 = scalar_lea.vmem [#allocation5], 128
    %v965 = vld [vmem:[%s964] sm:$0xf]
    %v966 = vld [vmem:[%s964 + $0x4] sm:$0xf]
    %v967 = vld [vmem:[%s964 + $0x8] sm:$0xf]
    %v968 = vld [vmem:[%s964 + $0xc] sm:$0xf]
    %v969 = vld [vmem:[%s964 + $0x10] sm:$0xf]
    %v970 = vld [vmem:[%s964 + $0x14] sm:$0xf]
    %v971 = vld [vmem:[%s964 + $0x18] sm:$0xf]
    %v972 = vld [vmem:[%s964 + $0x1c] sm:$0xf]
    %v973 = vld [vmem:[%s964 + $0x20] sm:$0xf]
    %v974 = vld [vmem:[%s964 + $0x24] sm:$0xf]
    %v975 = vld [vmem:[%s964 + $0x28] sm:$0xf]
    %v976 = vld [vmem:[%s964 + $0x2c] sm:$0xf]
    %v977 = vld [vmem:[%s964 + $0x30] sm:$0xf]
    %v978 = vld [vmem:[%s964 + $0x34] sm:$0xf]
    %v979 = vld [vmem:[%s964 + $0x38] sm:$0xf]
    %v980 = vld [vmem:[%s964 + $0x3c] sm:$0xf]
    %s981 = scalar_lea.vmem %s2, 2
    %v982 = vld [vmem:[%s981] sm:$0x1]
    %v984 = vlaneseq
    %v985 = vshrl.u32 %v984, 7
    %v986 = vsub.s32 0, %v985
    %v987 = vrot.slane %v982, %v986
    %v1005 = vunpack.c.l.b16 %v965
    %v1006 = vunpack.c.l.b16 %v966
    %v1007 = vunpack.c.l.b16 %v967
    %v1008 = vunpack.c.l.b16 %v968
    %v1009 = vunpack.c.l.b16 %v969
    %v1010 = vunpack.c.l.b16 %v970
    %v1011 = vunpack.c.l.b16 %v971
    %v1012 = vunpack.c.l.b16 %v972
    %v1013 = vunpack.c.l.b16 %v973
    %v1014 = vunpack.c.l.b16 %v974
    %v1015 = vunpack.c.l.b16 %v975
    %v1016 = vunpack.c.l.b16 %v976
    %v1017 = vunpack.c.l.b16 %v977
    %v1018 = vunpack.c.l.b16 %v978
    %v1019 = vunpack.c.l.b16 %v979
    %v1020 = vunpack.c.l.b16 %v980
    %v1021 = vpack.c.b16 %v1006, %v1005
    %v1022 = vpack.c.b16 %v1008, %v1007
    %v1023 = vpack.c.b16 %v1010, %v1009
    %v1024 = vpack.c.b16 %v1012, %v1011
    %v1025 = vpack.c.b16 %v1014, %v1013
    %v1026 = vpack.c.b16 %v1016, %v1015
    %v1027 = vpack.c.b16 %v1018, %v1017
    %v1028 = vpack.c.b16 %v1020, %v1019
    %1037 = vmatprep.subr.bf16.mxu0 0
    %1038 = vmatpush1.bf16.msra.mxu0 %v1021
    %1039 = vmatprep.subr.bf16.mxu0 0
    %1040 = vmatpush1.bf16.msra.mxu0 %v1022
    %1041 = vmatprep.subr.bf16.mxu0 0
    %1042 = vmatpush1.bf16.msra.mxu0 %v1023
    %1043 = vmatprep.subr.bf16.mxu0 0
    %1044 = vmatpush1.bf16.msra.mxu0 %v1024
    %1045 = vmatprep.subr.bf16.mxu0 0
    %1046 = vmatpush1.bf16.msra.mxu0 %v1025
    %1047 = vmatprep.subr.bf16.mxu0 0
    %1048 = vmatpush1.bf16.msra.mxu0 %v1026
    %1049 = vmatprep.subr.bf16.mxu0 0
    %1050 = vmatpush1.bf16.msra.mxu0 %v1027
    %1051 = vmatprep.subr.bf16.mxu0 0
    %1052 = vmatpush1.bf16.msra.mxu0 %v1028
    %1053 = vmatprep.subr.bf16.mxu0 0
    %1054 = vmatpush1.bf16.msra.mxu0 0
    %1055 = vmatprep.subr.bf16.mxu0 0
    %1056 = vmatpush1.bf16.msra.mxu0 0
    %1057 = vmatprep.subr.bf16.mxu0 0
    %1058 = vmatpush1.bf16.msra.mxu0 0
    %1059 = vmatprep.subr.bf16.mxu0 0
    %1060 = vmatpush1.bf16.msra.mxu0 0
    %1061 = vmatprep.subr.bf16.mxu0 0
    %1062 = vmatpush1.bf16.msra.mxu0 0
    %1063 = vmatprep.subr.bf16.mxu0 0
    %1064 = vmatpush1.bf16.msra.mxu0 0
    %1065 = vmatprep.subr.bf16.mxu0 0
    %1066 = vmatpush1.bf16.msra.mxu0 0
    %1067 = vmatprep.subr.bf16.mxu0 0
    %1068 = vmatpush1.bf16.msra.mxu0 0
    %1069 = vmatprep.mubr.bf16.mxu0 0
    %1070 = vmatmul.mubr.bf16.gmra.mrb[0].mxu0 %v963
    %v1071 = vpop.f32.mrb[0].mxu0
    %v1072 = vadd.f32 %v987, %v1071
    %v1073 = vpop.f32.mrb[0].mxu0
    %v1074 = vpop.f32.mrb[0].mxu0
    %v1075 = vpop.f32.mrb[0].mxu0
    %1076 = vdwg.mxu0
    %s1077 = scalar_lea.vmem %s3, 2
    %v1078 = vld [vmem:[%s1077] sm:$0x1]
    %s1079 = scalar_lea.vmem %s4, 2
    %v1080 = vld [vmem:[%s1079] sm:$0x1]
    %1081 = vadd.xlane.f32.xlu0 %v1072
    %v1082 = vpop.xlane.xlu0 %1081
    %v1083 = vmul.f32 %v1082, %v270
    %v1084 = vmul.f32 %v1072, %v1072
    %1085 = vadd.xlane.f32.xlu0 %v1084
    %v1086 = vpop.xlane.xlu0 %1085
    %v1087 = vmul.f32 %v1086, %v270
    %v1088 = vmul.f32 %v1083, %v1083
    %v1089 = vsub.f32 %v1087, %v1088
    %v1090 = vmax.f32 %v1089, 0.0
    %v1091 = vsub.f32 %v1072, %v1083
    %v1092 = vadd.f32 %v1090, 1e-05
    %v1093 = vrsqrt.pop %v1092
    %v1094 = vmul.f32 %v1091, %v1093
    %v1096 = vlaneseq
    %v1097 = vshrl.u32 %v1096, 7
    %v1098 = vsub.s32 0, %v1097
    %v1099 = vrot.slane %v1078, %v1098
    %v1101 = vmul.f32 %v1094, %v1099
    %v1103 = vlaneseq
    %v1104 = vshrl.u32 %v1103, 7
    %v1105 = vsub.s32 0, %v1104
    %v1106 = vrot.slane %v1080, %v1105
    %v1108 = vadd.f32 %v1101, %v1106
    %v1109 = vpack.c.bf16 %v1108, %v1108
    %s1110 = scalar_lea.vmem [#allocation7], 128
    %v1111 = vld [vmem:[%s1110] sm:$0xf]
    %v1112 = vld [vmem:[%s1110 + $0x4] sm:$0xf]
    %v1113 = vld [vmem:[%s1110 + $0x8] sm:$0xf]
    %v1114 = vld [vmem:[%s1110 + $0xc] sm:$0xf]
    %v1115 = vld [vmem:[%s1110 + $0x10] sm:$0xf]
    %v1116 = vld [vmem:[%s1110 + $0x14] sm:$0xf]
    %v1117 = vld [vmem:[%s1110 + $0x18] sm:$0xf]
    %v1118 = vld [vmem:[%s1110 + $0x1c] sm:$0xf]
    %v1119 = vld [vmem:[%s1110 + $0x20] sm:$0xf]
    %v1120 = vld [vmem:[%s1110 + $0x24] sm:$0xf]
    %v1121 = vld [vmem:[%s1110 + $0x28] sm:$0xf]
    %v1122 = vld [vmem:[%s1110 + $0x2c] sm:$0xf]
    %v1123 = vld [vmem:[%s1110 + $0x30] sm:$0xf]
    %v1124 = vld [vmem:[%s1110 + $0x34] sm:$0xf]
    %v1125 = vld [vmem:[%s1110 + $0x38] sm:$0xf]
    %v1126 = vld [vmem:[%s1110 + $0x3c] sm:$0xf]
    %s1127 = scalar_lea.vmem [#allocation8], 2
    %v1128 = vld [vmem:[%s1127] sm:$0x1]
    %v1130 = vlaneseq
    %v1131 = vshrl.u32 %v1130, 7
    %v1132 = vsub.s32 0, %v1131
    %v1133 = vrot.slane %v1128, %v1132
    %v1151 = vunpack.c.l.b16 %v1111
    %v1152 = vunpack.c.l.b16 %v1112
    %v1153 = vunpack.c.l.b16 %v1113
    %v1154 = vunpack.c.l.b16 %v1114
    %v1155 = vunpack.c.l.b16 %v1115
    %v1156 = vunpack.c.l.b16 %v1116
    %v1157 = vunpack.c.l.b16 %v1117
    %v1158 = vunpack.c.l.b16 %v1118
    %v1159 = vunpack.c.l.b16 %v1119
    %v1160 = vunpack.c.l.b16 %v1120
    %v1161 = vunpack.c.l.b16 %v1121
    %v1162 = vunpack.c.l.b16 %v1122
    %v1163 = vunpack.c.l.b16 %v1123
    %v1164 = vunpack.c.l.b16 %v1124
    %v1165 = vunpack.c.l.b16 %v1125
    %v1166 = vunpack.c.l.b16 %v1126
    %v1167 = vpack.c.b16 %v1152, %v1151
    %v1168 = vpack.c.b16 %v1154, %v1153
    %v1169 = vpack.c.b16 %v1156, %v1155
    %v1170 = vpack.c.b16 %v1158, %v1157
    %v1171 = vpack.c.b16 %v1160, %v1159
    %v1172 = vpack.c.b16 %v1162, %v1161
    %v1173 = vpack.c.b16 %v1164, %v1163
    %v1174 = vpack.c.b16 %v1166, %v1165
    %1183 = vmatprep.subr.bf16.mxu0 0
    %1184 = vmatpush1.bf16.msra.mxu0 %v1167
    %1185 = vmatprep.subr.bf16.mxu0 0
    %1186 = vmatpush1.bf16.msra.mxu0 %v1168
    %1187 = vmatprep.subr.bf16.mxu0 0
    %1188 = vmatpush1.bf16.msra.mxu0 %v1169
    %1189 = vmatprep.subr.bf16.mxu0 0
    %1190 = vmatpush1.bf16.msra.mxu0 %v1170
    %1191 = vmatprep.subr.bf16.mxu0 0
    %1192 = vmatpush1.bf16.msra.mxu0 %v1171
    %1193 = vmatprep.subr.bf16.mxu0 0
    %1194 = vmatpush1.bf16.msra.mxu0 %v1172
    %1195 = vmatprep.subr.bf16.mxu0 0
    %1196 = vmatpush1.bf16.msra.mxu0 %v1173
    %1197 = vmatprep.subr.bf16.mxu0 0
    %1198 = vmatpush1.bf16.msra.mxu0 %v1174
    %1199 = vmatprep.subr.bf16.mxu0 0
    %1200 = vmatpush1.bf16.msra.mxu0 0
    %1201 = vmatprep.subr.bf16.mxu0 0
    %1202 = vmatpush1.bf16.msra.mxu0 0
    %1203 = vmatprep.subr.bf16.mxu0 0
    %1204 = vmatpush1.bf16.msra.mxu0 0
    %1205 = vmatprep.subr.bf16.mxu0 0
    %1206 = vmatpush1.bf16.msra.mxu0 0
    %1207 = vmatprep.subr.bf16.mxu0 0
    %1208 = vmatpush1.bf16.msra.mxu0 0
    %1209 = vmatprep.subr.bf16.mxu0 0
    %1210 = vmatpush1.bf16.msra.mxu0 0
    %1211 = vmatprep.subr.bf16.mxu0 0
    %1212 = vmatpush1.bf16.msra.mxu0 0
    %1213 = vmatprep.subr.bf16.mxu0 0
    %1214 = vmatpush1.bf16.msra.mxu0 0
    %1215 = vmatprep.mubr.bf16.mxu0 0
    %1216 = vmatmul.mubr.bf16.gmra.mrb[0].mxu0 %v1109
    %v1217 = vpop.f32.mrb[0].mxu0
    %v1218 = vadd.f32 %v1133, %v1217
    %v1219 = vpop.f32.mrb[0].mxu0
    %v1220 = vpop.f32.mrb[0].mxu0
    %v1221 = vpop.f32.mrb[0].mxu0
    %1222 = vdwg.mxu0
    %v1223 = vmax.f32 %v1218, 0.0
    %v1224 = vpack.c.bf16 %v1223, %v1223
    %s1225 = scalar_lea.vmem [#allocation10], 128
    %v1226 = vld [vmem:[%s1225] sm:$0xf]
    %v1227 = vld [vmem:[%s1225 + $0x4] sm:$0xf]
    %v1228 = vld [vmem:[%s1225 + $0x8] sm:$0xf]
    %v1229 = vld [vmem:[%s1225 + $0xc] sm:$0xf]
    %v1230 = vld [vmem:[%s1225 + $0x10] sm:$0xf]
    %v1231 = vld [vmem:[%s1225 + $0x14] sm:$0xf]
    %v1232 = vld [vmem:[%s1225 + $0x18] sm:$0xf]
    %v1233 = vld [vmem:[%s1225 + $0x1c] sm:$0xf]
    %v1234 = vld [vmem:[%s1225 + $0x20] sm:$0xf]
    %v1235 = vld [vmem:[%s1225 + $0x24] sm:$0xf]
    %v1236 = vld [vmem:[%s1225 + $0x28] sm:$0xf]
    %v1237 = vld [vmem:[%s1225 + $0x2c] sm:$0xf]
    %v1238 = vld [vmem:[%s1225 + $0x30] sm:$0xf]
    %v1239 = vld [vmem:[%s1225 + $0x34] sm:$0xf]
    %v1240 = vld [vmem:[%s1225 + $0x38] sm:$0xf]
    %v1241 = vld [vmem:[%s1225 + $0x3c] sm:$0xf]
    %v1258 = vunpack.c.l.b16 %v1226
    %v1259 = vunpack.c.l.b16 %v1227
    %v1260 = vunpack.c.l.b16 %v1228
    %v1261 = vunpack.c.l.b16 %v1229
    %v1262 = vunpack.c.l.b16 %v1230
    %v1263 = vunpack.c.l.b16 %v1231
    %v1264 = vunpack.c.l.b16 %v1232
    %v1265 = vunpack.c.l.b16 %v1233
    %v1266 = vunpack.c.l.b16 %v1234
    %v1267 = vunpack.c.l.b16 %v1235
    %v1268 = vunpack.c.l.b16 %v1236
    %v1269 = vunpack.c.l.b16 %v1237
    %v1270 = vunpack.c.l.b16 %v1238
    %v1271 = vunpack.c.l.b16 %v1239
    %v1272 = vunpack.c.l.b16 %v1240
    %v1273 = vunpack.c.l.b16 %v1241
    %v1274 = vpack.c.b16 %v1259, %v1258
    %v1275 = vpack.c.b16 %v1261, %v1260
    %v1276 = vpack.c.b16 %v1263, %v1262
    %v1277 = vpack.c.b16 %v1265, %v1264
    %v1278 = vpack.c.b16 %v1267, %v1266
    %v1279 = vpack.c.b16 %v1269, %v1268
    %v1280 = vpack.c.b16 %v1271, %v1270
    %v1281 = vpack.c.b16 %v1273, %v1272
    %1290 = vmatprep.subr.bf16.mxu0 0
    %1291 = vmatpush1.bf16.msra.mxu0 %v1274
    %1292 = vmatprep.subr.bf16.mxu0 0
    %1293 = vmatpush1.bf16.msra.mxu0 %v1275
    %1294 = vmatprep.subr.bf16.mxu0 0
    %1295 = vmatpush1.bf16.msra.mxu0 %v1276
    %1296 = vmatprep.subr.bf16.mxu0 0
    %1297 = vmatpush1.bf16.msra.mxu0 %v1277
    %1298 = vmatprep.subr.bf16.mxu0 0
    %1299 = vmatpush1.bf16.msra.mxu0 %v1278
    %1300 = vmatprep.subr.bf16.mxu0 0
    %1301 = vmatpush1.bf16.msra.mxu0 %v1279
    %1302 = vmatprep.subr.bf16.mxu0 0
    %1303 = vmatpush1.bf16.msra.mxu0 %v1280
    %1304 = vmatprep.subr.bf16.mxu0 0
    %1305 = vmatpush1.bf16.msra.mxu0 %v1281
    %1306 = vmatprep.subr.bf16.mxu0 0
    %1307 = vmatpush1.bf16.msra.mxu0 0
    %1308 = vmatprep.subr.bf16.mxu0 0
    %1309 = vmatpush1.bf16.msra.mxu0 0
    %1310 = vmatprep.subr.bf16.mxu0 0
    %1311 = vmatpush1.bf16.msra.mxu0 0
    %1312 = vmatprep.subr.bf16.mxu0 0
    %1313 = vmatpush1.bf16.msra.mxu0 0
    %1314 = vmatprep.subr.bf16.mxu0 0
    %1315 = vmatpush1.bf16.msra.mxu0 0
    %1316 = vmatprep.subr.bf16.mxu0 0
    %1317 = vmatpush1.bf16.msra.mxu0 0
    %1318 = vmatprep.subr.bf16.mxu0 0
    %1319 = vmatpush1.bf16.msra.mxu0 0
    %1320 = vmatprep.subr.bf16.mxu0 0
    %1321 = vmatpush1.bf16.msra.mxu0 0
    %1322 = vmatprep.mubr.bf16.mxu0 0
    %1323 = vmatmul.mubr.bf16.gmra.mrb[0].mxu0 %v1224
    %v1324 = vpop.f32.mrb[0].mxu0
    %v1325 = vadd.f32 0.0, %v1324
    %v1326 = vpop.f32.mrb[0].mxu0
    %v1327 = vpop.f32.mrb[0].mxu0
    %v1328 = vpop.f32.mrb[0].mxu0
    %1329 = vdwg.mxu0
    %v1330 = vadd.f32 %v1108, %v1325
    %s1331 = scalar_lea.vmem [#allocation11], 2
    %v1332 = vld [vmem:[%s1331] sm:$0x1]
    %v1334 = vlaneseq
    %v1335 = vshrl.u32 %v1334, 7
    %v1336 = vsub.s32 0, %v1335
    %v1337 = vrot.slane %v1332, %v1336
    %v1339 = vadd.f32 %v1330, %v1337
    %s1340 = scalar_lea.vmem %s9, 2
    %v1341 = vld [vmem:[%s1340] sm:$0x1]
    %s1342 = scalar_lea.vmem [#allocation13], 2
    %v1343 = vld [vmem:[%s1342] sm:$0x1]
    %1344 = vadd.xlane.f32.xlu0 %v1339
    %v1345 = vpop.xlane.xlu0 %1344
    %v1346 = vmul.f32 %v1345, %v270
    %v1347 = vmul.f32 %v1339, %v1339
    %1348 = vadd.xlane.f32.xlu0 %v1347
    %v1349 = vpop.xlane.xlu0 %1348
    %v1350 = vmul.f32 %v1349, %v270
    %v1351 = vmul.f32 %v1346, %v1346
    %v1352 = vsub.f32 %v1350, %v1351
    %v1353 = vmax.f32 %v1352, 0.0
    %v1354 = vsub.f32 %v1339, %v1346
    %v1355 = vadd.f32 %v1353, 1e-05
    %v1356 = vrsqrt.pop %v1355
    %v1357 = vmul.f32 %v1354, %v1356
    %v1359 = vlaneseq
    %v1360 = vshrl.u32 %v1359, 7
    %v1361 = vsub.s32 0, %v1360
    %v1362 = vrot.slane %v1341, %v1361
    %v1364 = vmul.f32 %v1357, %v1362
    %v1366 = vlaneseq
    %v1367 = vshrl.u32 %v1366, 7
    %v1368 = vsub.s32 0, %v1367
    %v1369 = vrot.slane %v1343, %v1368
    %v1371 = vadd.f32 %v1364, %v1369
    %v1372 = vpack.c.bf16 %v1371, %v1371
    %s1373 = scalar_lea.vmem [#allocation5], 192
    %v1374 = vld [vmem:[%s1373] sm:$0xf]
    %v1375 = vld [vmem:[%s1373 + $0x4] sm:$0xf]
    %v1376 = vld [vmem:[%s1373 + $0x8] sm:$0xf]
    %v1377 = vld [vmem:[%s1373 + $0xc] sm:$0xf]
    %v1378 = vld [vmem:[%s1373 + $0x10] sm:$0xf]
    %v1379 = vld [vmem:[%s1373 + $0x14] sm:$0xf]
    %v1380 = vld [vmem:[%s1373 + $0x18] sm:$0xf]
    %v1381 = vld [vmem:[%s1373 + $0x1c] sm:$0xf]
    %v1382 = vld [vmem:[%s1373 + $0x20] sm:$0xf]
    %v1383 = vld [vmem:[%s1373 + $0x24] sm:$0xf]
    %v1384 = vld [vmem:[%s1373 + $0x28] sm:$0xf]
    %v1385 = vld [vmem:[%s1373 + $0x2c] sm:$0xf]
    %v1386 = vld [vmem:[%s1373 + $0x30] sm:$0xf]
    %v1387 = vld [vmem:[%s1373 + $0x34] sm:$0xf]
    %v1388 = vld [vmem:[%s1373 + $0x38] sm:$0xf]
    %v1389 = vld [vmem:[%s1373 + $0x3c] sm:$0xf]
    %s1390 = scalar_lea.vmem %s2, 3
    %v1391 = vld [vmem:[%s1390] sm:$0x1]
    %v1393 = vlaneseq
    %v1394 = vshrl.u32 %v1393, 7
    %v1395 = vsub.s32 0, %v1394
    %v1396 = vrot.slane %v1391, %v1395
    %v1414 = vunpack.c.l.b16 %v1374
    %v1415 = vunpack.c.l.b16 %v1375
    %v1416 = vunpack.c.l.b16 %v1376
    %v1417 = vunpack.c.l.b16 %v1377
    %v1418 = vunpack.c.l.b16 %v1378
    %v1419 = vunpack.c.l.b16 %v1379
    %v1420 = vunpack.c.l.b16 %v1380
    %v1421 = vunpack.c.l.b16 %v1381
    %v1422 = vunpack.c.l.b16 %v1382
    %v1423 = vunpack.c.l.b16 %v1383
    %v1424 = vunpack.c.l.b16 %v1384
    %v1425 = vunpack.c.l.b16 %v1385
    %v1426 = vunpack.c.l.b16 %v1386
    %v1427 = vunpack.c.l.b16 %v1387
    %v1428 = vunpack.c.l.b16 %v1388
    %v1429 = vunpack.c.l.b16 %v1389
    %v1430 = vpack.c.b16 %v1415, %v1414
    %v1431 = vpack.c.b16 %v1417, %v1416
    %v1432 = vpack.c.b16 %v1419, %v1418
    %v1433 = vpack.c.b16 %v1421, %v1420
    %v1434 = vpack.c.b16 %v1423, %v1422
    %v1435 = vpack.c.b16 %v1425, %v1424
    %v1436 = vpack.c.b16 %v1427, %v1426
    %v1437 = vpack.c.b16 %v1429, %v1428
    %1446 = vmatprep.subr.bf16.mxu0 0
    %1447 = vmatpush1.bf16.msra.mxu0 %v1430
    %1448 = vmatprep.subr.bf16.mxu0 0
    %1449 = vmatpush1.bf16.msra.mxu0 %v1431
    %1450 = vmatprep.subr.bf16.mxu0 0
    %1451 = vmatpush1.bf16.msra.mxu0 %v1432
    %1452 = vmatprep.subr.bf16.mxu0 0
    %1453 = vmatpush1.bf16.msra.mxu0 %v1433
    %1454 = vmatprep.subr.bf16.mxu0 0
    %1455 = vmatpush1.bf16.msra.mxu0 %v1434
    %1456 = vmatprep.subr.bf16.mxu0 0
    %1457 = vmatpush1.bf16.msra.mxu0 %v1435
    %1458 = vmatprep.subr.bf16.mxu0 0
    %1459 = vmatpush1.bf16.msra.mxu0 %v1436
    %1460 = vmatprep.subr.bf16.mxu0 0
    %1461 = vmatpush1.bf16.msra.mxu0 %v1437
    %1462 = vmatprep.subr.bf16.mxu0 0
    %1463 = vmatpush1.bf16.msra.mxu0 0
    %1464 = vmatprep.subr.bf16.mxu0 0
    %1465 = vmatpush1.bf16.msra.mxu0 0
    %1466 = vmatprep.subr.bf16.mxu0 0
    %1467 = vmatpush1.bf16.msra.mxu0 0
    %1468 = vmatprep.subr.bf16.mxu0 0
    %1469 = vmatpush1.bf16.msra.mxu0 0
    %1470 = vmatprep.subr.bf16.mxu0 0
    %1471 = vmatpush1.bf16.msra.mxu0 0
    %1472 = vmatprep.subr.bf16.mxu0 0
    %1473 = vmatpush1.bf16.msra.mxu0 0
    %1474 = vmatprep.subr.bf16.mxu0 0
    %1475 = vmatpush1.bf16.msra.mxu0 0
    %1476 = vmatprep.subr.bf16.mxu0 0
    %1477 = vmatpush1.bf16.msra.mxu0 0
    %1478 = vmatprep.mubr.bf16.mxu0 0
    %1479 = vmatmul.mubr.bf16.gmra.mrb[0].mxu0 %v1372
    %v1480 = vpop.f32.mrb[0].mxu0
    %v1481 = vadd.f32 %v1396, %v1480
    %v1482 = vpop.f32.mrb[0].mxu0
    %v1483 = vpop.f32.mrb[0].mxu0
    %v1484 = vpop.f32.mrb[0].mxu0
    %1485 = vdwg.mxu0
    %s1486 = scalar_lea.vmem %s3, 3
    %v1487 = vld [vmem:[%s1486] sm:$0x1]
    %s1488 = scalar_lea.vmem %s4, 3
    %v1489 = vld [vmem:[%s1488] sm:$0x1]
    %1490 = vadd.xlane.f32.xlu0 %v1481
    %v1491 = vpop.xlane.xlu0 %1490
    %v1492 = vmul.f32 %v1491, %v270
    %v1493 = vmul.f32 %v1481, %v1481
    %1494 = vadd.xlane.f32.xlu0 %v1493
    %v1495 = vpop.xlane.xlu0 %1494
    %v1496 = vmul.f32 %v1495, %v270
    %v1497 = vmul.f32 %v1492, %v1492
    %v1498 = vsub.f32 %v1496, %v1497
    %v1499 = vmax.f32 %v1498, 0.0
    %v1500 = vsub.f32 %v1481, %v1492
    %v1501 = vadd.f32 %v1499, 1e-05
    %v1502 = vrsqrt.pop %v1501
    %v1503 = vmul.f32 %v1500, %v1502
    %v1505 = vlaneseq
    %v1506 = vshrl.u32 %v1505, 7
    %v1507 = vsub.s32 0, %v1506
    %v1508 = vrot.slane %v1487, %v1507
    %v1510 = vmul.f32 %v1503, %v1508
    %v1512 = vlaneseq
    %v1513 = vshrl.u32 %v1512, 7
    %v1514 = vsub.s32 0, %v1513
    %v1515 = vrot.slane %v1489, %v1514
    %v1517 = vadd.f32 %v1510, %v1515
    %v1518 = vpack.c.bf16 %v1517, %v1517
    %s1519 = scalar_lea.vmem [#allocation7], 192
    %v1520 = vld [vmem:[%s1519] sm:$0xf]
    %v1521 = vld [vmem:[%s1519 + $0x4] sm:$0xf]
    %v1522 = vld [vmem:[%s1519 + $0x8] sm:$0xf]
    %v1523 = vld [vmem:[%s1519 + $0xc] sm:$0xf]
    %v1524 = vld [vmem:[%s1519 + $0x10] sm:$0xf]
    %v1525 = vld [vmem:[%s1519 + $0x14] sm:$0xf]
    %v1526 = vld [vmem:[%s1519 + $0x18] sm:$0xf]
    %v1527 = vld [vmem:[%s1519 + $0x1c] sm:$0xf]
    %v1528 = vld [vmem:[%s1519 + $0x20] sm:$0xf]
    %v1529 = vld [vmem:[%s1519 + $0x24] sm:$0xf]
    %v1530 = vld [vmem:[%s1519 + $0x28] sm:$0xf]
    %v1531 = vld [vmem:[%s1519 + $0x2c] sm:$0xf]
    %v1532 = vld [vmem:[%s1519 + $0x30] sm:$0xf]
    %v1533 = vld [vmem:[%s1519 + $0x34] sm:$0xf]
    %v1534 = vld [vmem:[%s1519 + $0x38] sm:$0xf]
    %v1535 = vld [vmem:[%s1519 + $0x3c] sm:$0xf]
    %s1536 = scalar_lea.vmem [#allocation8], 3
    %v1537 = vld [vmem:[%s1536] sm:$0x1]
    %v1539 = vlaneseq
    %v1540 = vshrl.u32 %v1539, 7
    %v1541 = vsub.s32 0, %v1540
    %v1542 = vrot.slane %v1537, %v1541
    %v1560 = vunpack.c.l.b16 %v1520
    %v1561 = vunpack.c.l.b16 %v1521
    %v1562 = vunpack.c.l.b16 %v1522
    %v1563 = vunpack.c.l.b16 %v1523
    %v1564 = vunpack.c.l.b16 %v1524
    %v1565 = vunpack.c.l.b16 %v1525
    %v1566 = vunpack.c.l.b16 %v1526
    %v1567 = vunpack.c.l.b16 %v1527
    %v1568 = vunpack.c.l.b16 %v1528
    %v1569 = vunpack.c.l.b16 %v1529
    %v1570 = vunpack.c.l.b16 %v1530
    %v1571 = vunpack.c.l.b16 %v1531
    %v1572 = vunpack.c.l.b16 %v1532
    %v1573 = vunpack.c.l.b16 %v1533
    %v1574 = vunpack.c.l.b16 %v1534
    %v1575 = vunpack.c.l.b16 %v1535
    %v1576 = vpack.c.b16 %v1561, %v1560
    %v1577 = vpack.c.b16 %v1563, %v1562
    %v1578 = vpack.c.b16 %v1565, %v1564
    %v1579 = vpack.c.b16 %v1567, %v1566
    %v1580 = vpack.c.b16 %v1569, %v1568
    %v1581 = vpack.c.b16 %v1571, %v1570
    %v1582 = vpack.c.b16 %v1573, %v1572
    %v1583 = vpack.c.b16 %v1575, %v1574
    %1592 = vmatprep.subr.bf16.mxu0 0
    %1593 = vmatpush1.bf16.msra.mxu0 %v1576
    %1594 = vmatprep.subr.bf16.mxu0 0
    %1595 = vmatpush1.bf16.msra.mxu0 %v1577
    %1596 = vmatprep.subr.bf16.mxu0 0
    %1597 = vmatpush1.bf16.msra.mxu0 %v1578
    %1598 = vmatprep.subr.bf16.mxu0 0
    %1599 = vmatpush1.bf16.msra.mxu0 %v1579
    %1600 = vmatprep.subr.bf16.mxu0 0
    %1601 = vmatpush1.bf16.msra.mxu0 %v1580
    %1602 = vmatprep.subr.bf16.mxu0 0
    %1603 = vmatpush1.bf16.msra.mxu0 %v1581
    %1604 = vmatprep.subr.bf16.mxu0 0
    %1605 = vmatpush1.bf16.msra.mxu0 %v1582
    %1606 = vmatprep.subr.bf16.mxu0 0
    %1607 = vmatpush1.bf16.msra.mxu0 %v1583
    %1608 = vmatprep.subr.bf16.mxu0 0
    %1609 = vmatpush1.bf16.msra.mxu0 0
    %1610 = vmatprep.subr.bf16.mxu0 0
    %1611 = vmatpush1.bf16.msra.mxu0 0
    %1612 = vmatprep.subr.bf16.mxu0 0
    %1613 = vmatpush1.bf16.msra.mxu0 0
    %1614 = vmatprep.subr.bf16.mxu0 0
    %1615 = vmatpush1.bf16.msra.mxu0 0
    %1616 = vmatprep.subr.bf16.mxu0 0
    %1617 = vmatpush1.bf16.msra.mxu0 0
    %1618 = vmatprep.subr.bf16.mxu0 0
    %1619 = vmatpush1.bf16.msra.mxu0 0
    %1620 = vmatprep.subr.bf16.mxu0 0
    %1621 = vmatpush1.bf16.msra.mxu0 0
    %1622 = vmatprep.subr.bf16.mxu0 0
    %1623 = vmatpush1.bf16.msra.mxu0 0
    %1624 = vmatprep.mubr.bf16.mxu0 0
    %1625 = vmatmul.mubr.bf16.gmra.mrb[0].mxu0 %v1518
    %v1626 = vpop.f32.mrb[0].mxu0
    %v1627 = vadd.f32 %v1542, %v1626
    %v1628 = vpop.f32.mrb[0].mxu0
    %v1629 = vpop.f32.mrb[0].mxu0
    %v1630 = vpop.f32.mrb[0].mxu0
    %1631 = vdwg.mxu0
    %v1632 = vmax.f32 %v1627, 0.0
    %v1633 = vpack.c.bf16 %v1632, %v1632
    %s1634 = scalar_lea.vmem [#allocation10], 192
    %v1635 = vld [vmem:[%s1634] sm:$0xf]
    %v1636 = vld [vmem:[%s1634 + $0x4] sm:$0xf]
    %v1637 = vld [vmem:[%s1634 + $0x8] sm:$0xf]
    %v1638 = vld [vmem:[%s1634 + $0xc] sm:$0xf]
    %v1639 = vld [vmem:[%s1634 + $0x10] sm:$0xf]
    %v1640 = vld [vmem:[%s1634 + $0x14] sm:$0xf]
    %v1641 = vld [vmem:[%s1634 + $0x18] sm:$0xf]
    %v1642 = vld [vmem:[%s1634 + $0x1c] sm:$0xf]
    %v1643 = vld [vmem:[%s1634 + $0x20] sm:$0xf]
    %v1644 = vld [vmem:[%s1634 + $0x24] sm:$0xf]
    %v1645 = vld [vmem:[%s1634 + $0x28] sm:$0xf]
    %v1646 = vld [vmem:[%s1634 + $0x2c] sm:$0xf]
    %v1647 = vld [vmem:[%s1634 + $0x30] sm:$0xf]
    %v1648 = vld [vmem:[%s1634 + $0x34] sm:$0xf]
    %v1649 = vld [vmem:[%s1634 + $0x38] sm:$0xf]
    %v1650 = vld [vmem:[%s1634 + $0x3c] sm:$0xf]
    %v1667 = vunpack.c.l.b16 %v1635
    %v1668 = vunpack.c.l.b16 %v1636
    %v1669 = vunpack.c.l.b16 %v1637
    %v1670 = vunpack.c.l.b16 %v1638
    %v1671 = vunpack.c.l.b16 %v1639
    %v1672 = vunpack.c.l.b16 %v1640
    %v1673 = vunpack.c.l.b16 %v1641
    %v1674 = vunpack.c.l.b16 %v1642
    %v1675 = vunpack.c.l.b16 %v1643
    %v1676 = vunpack.c.l.b16 %v1644
    %v1677 = vunpack.c.l.b16 %v1645
    %v1678 = vunpack.c.l.b16 %v1646
    %v1679 = vunpack.c.l.b16 %v1647
    %v1680 = vunpack.c.l.b16 %v1648
    %v1681 = vunpack.c.l.b16 %v1649
    %v1682 = vunpack.c.l.b16 %v1650
    %v1683 = vpack.c.b16 %v1668, %v1667
    %v1684 = vpack.c.b16 %v1670, %v1669
    %v1685 = vpack.c.b16 %v1672, %v1671
    %v1686 = vpack.c.b16 %v1674, %v1673
    %v1687 = vpack.c.b16 %v1676, %v1675
    %v1688 = vpack.c.b16 %v1678, %v1677
    %v1689 = vpack.c.b16 %v1680, %v1679
    %v1690 = vpack.c.b16 %v1682, %v1681
    %1699 = vmatprep.subr.bf16.mxu0 0
    %1700 = vmatpush1.bf16.msra.mxu0 %v1683
    %1701 = vmatprep.subr.bf16.mxu0 0
    %1702 = vmatpush1.bf16.msra.mxu0 %v1684
    %1703 = vmatprep.subr.bf16.mxu0 0
    %1704 = vmatpush1.bf16.msra.mxu0 %v1685
    %1705 = vmatprep.subr.bf16.mxu0 0
    %1706 = vmatpush1.bf16.msra.mxu0 %v1686
    %1707 = vmatprep.subr.bf16.mxu0 0
    %1708 = vmatpush1.bf16.msra.mxu0 %v1687
    %1709 = vmatprep.subr.bf16.mxu0 0
    %1710 = vmatpush1.bf16.msra.mxu0 %v1688
    %1711 = vmatprep.subr.bf16.mxu0 0
    %1712 = vmatpush1.bf16.msra.mxu0 %v1689
    %1713 = vmatprep.subr.bf16.mxu0 0
    %1714 = vmatpush1.bf16.msra.mxu0 %v1690
    %1715 = vmatprep.subr.bf16.mxu0 0
    %1716 = vmatpush1.bf16.msra.mxu0 0
    %1717 = vmatprep.subr.bf16.mxu0 0
    %1718 = vmatpush1.bf16.msra.mxu0 0
    %1719 = vmatprep.subr.bf16.mxu0 0
    %1720 = vmatpush1.bf16.msra.mxu0 0
    %1721 = vmatprep.subr.bf16.mxu0 0
    %1722 = vmatpush1.bf16.msra.mxu0 0
    %1723 = vmatprep.subr.bf16.mxu0 0
    %1724 = vmatpush1.bf16.msra.mxu0 0
    %1725 = vmatprep.subr.bf16.mxu0 0
    %1726 = vmatpush1.bf16.msra.mxu0 0
    %1727 = vmatprep.subr.bf16.mxu0 0
    %1728 = vmatpush1.bf16.msra.mxu0 0
    %1729 = vmatprep.subr.bf16.mxu0 0
    %1730 = vmatpush1.bf16.msra.mxu0 0
    %1731 = vmatprep.mubr.bf16.mxu0 0
    %1732 = vmatmul.mubr.bf16.gmra.mrb[0].mxu0 %v1633
    %v1733 = vpop.f32.mrb[0].mxu0
    %v1734 = vadd.f32 0.0, %v1733
    %v1735 = vpop.f32.mrb[0].mxu0
    %v1736 = vpop.f32.mrb[0].mxu0
    %v1737 = vpop.f32.mrb[0].mxu0
    %1738 = vdwg.mxu0
    %v1739 = vadd.f32 %v1517, %v1734
    %s1740 = scalar_lea.vmem [#allocation11], 3
    %v1741 = vld [vmem:[%s1740] sm:$0x1]
    %v1743 = vlaneseq
    %v1744 = vshrl.u32 %v1743, 7
    %v1745 = vsub.s32 0, %v1744
    %v1746 = vrot.slane %v1741, %v1745
    %v1748 = vadd.f32 %v1739, %v1746
    %1749 = vadd.xlane.f32.xlu0 %v1748
    %v1750 = vpop.xlane.xlu0 %1749
    %v1751 = vmul.f32 %v1750, %v270
    %v1752 = vmul.f32 %v1748, %v1748
    %1753 = vadd.xlane.f32.xlu0 %v1752
    %v1754 = vpop.xlane.xlu0 %1753
    %v1755 = vmul.f32 %v1754, %v270
    %v1756 = vmul.f32 %v1751, %v1751
    %v1757 = vsub.f32 %v1755, %v1756
    %v1758 = vmax.f32 %v1757, 0.0
    %v1759 = vsub.f32 %v1748, %v1751
    %v1760 = vadd.f32 %v1758, 1e-05
    %v1761 = vrsqrt.pop %v1760
    %v1762 = vmul.f32 %v1759, %v1761
    %v1763 = vpack.c.bf16 %v1762, %v1762
    %v1764 = vld [vmem:[#allocation14] sm:$0xf]
    %v1765 = vld [vmem:[#allocation14 + $0x4] sm:$0xf]
    %v1766 = vld [vmem:[#allocation14 + $0x8] sm:$0xf]
    %v1767 = vld [vmem:[#allocation14 + $0xc] sm:$0xf]
    %v1768 = vld [vmem:[#allocation14 + $0x10] sm:$0xf]
    %v1769 = vld [vmem:[#allocation14 + $0x14] sm:$0xf]
    %v1770 = vld [vmem:[#allocation14 + $0x18] sm:$0xf]
    %v1771 = vld [vmem:[#allocation14 + $0x1c] sm:$0xf]
    %v1772 = vld [vmem:[#allocation14 + $0x20] sm:$0xf]
    %v1773 = vld [vmem:[#allocation14 + $0x24] sm:$0xf]
    %v1774 = vld [vmem:[#allocation14 + $0x28] sm:$0xf]
    %v1775 = vld [vmem:[#allocation14 + $0x2c] sm:$0xf]
    %v1776 = vld [vmem:[#allocation14 + $0x30] sm:$0xf]
    %v1777 = vld [vmem:[#allocation14 + $0x34] sm:$0xf]
    %v1778 = vld [vmem:[#allocation14 + $0x38] sm:$0xf]
    %v1779 = vld [vmem:[#allocation14 + $0x3c] sm:$0xf]
    %v1780 = vld [vmem:[%s12] sm:$0x1]
    %v1782 = vlaneseq
    %v1783 = vshrl.u32 %v1782, 7
    %v1784 = vsub.s32 0, %v1783
    %v1785 = vrot.slane %v1780, %v1784
    %v1803 = vunpack.c.l.b16 %v1764
    %v1804 = vunpack.c.l.b16 %v1765
    %v1805 = vunpack.c.l.b16 %v1766
    %v1806 = vunpack.c.l.b16 %v1767
    %v1807 = vunpack.c.l.b16 %v1768
    %v1808 = vunpack.c.l.b16 %v1769
    %v1809 = vunpack.c.l.b16 %v1770
    %v1810 = vunpack.c.l.b16 %v1771
    %v1811 = vunpack.c.l.b16 %v1772
    %v1812 = vunpack.c.l.b16 %v1773
    %v1813 = vunpack.c.l.b16 %v1774
    %v1814 = vunpack.c.l.b16 %v1775
    %v1815 = vunpack.c.l.b16 %v1776
    %v1816 = vunpack.c.l.b16 %v1777
    %v1817 = vunpack.c.l.b16 %v1778
    %v1818 = vunpack.c.l.b16 %v1779
    %v1819 = vpack.c.b16 %v1804, %v1803
    %v1820 = vpack.c.b16 %v1806, %v1805
    %v1821 = vpack.c.b16 %v1808, %v1807
    %v1822 = vpack.c.b16 %v1810, %v1809
    %v1823 = vpack.c.b16 %v1812, %v1811
    %v1824 = vpack.c.b16 %v1814, %v1813
    %v1825 = vpack.c.b16 %v1816, %v1815
    %v1826 = vpack.c.b16 %v1818, %v1817
    %1835 = vmatprep.subr.bf16.mxu0 0
    %1836 = vmatpush1.bf16.msra.mxu0 %v1819
    %1837 = vmatprep.subr.bf16.mxu0 0
    %1838 = vmatpush1.bf16.msra.mxu0 %v1820
    %1839 = vmatprep.subr.bf16.mxu0 0
    %1840 = vmatpush1.bf16.msra.mxu0 %v1821
    %1841 = vmatprep.subr.bf16.mxu0 0
    %1842 = vmatpush1.bf16.msra.mxu0 %v1822
    %1843 = vmatprep.subr.bf16.mxu0 0
    %1844 = vmatpush1.bf16.msra.mxu0 %v1823
    %1845 = vmatprep.subr.bf16.mxu0 0
    %1846 = vmatpush1.bf16.msra.mxu0 %v1824
    %1847 = vmatprep.subr.bf16.mxu0 0
    %1848 = vmatpush1.bf16.msra.mxu0 %v1825
    %1849 = vmatprep.subr.bf16.mxu0 0
    %1850 = vmatpush1.bf16.msra.mxu0 %v1826
    %1851 = vmatprep.subr.bf16.mxu0 0
    %1852 = vmatpush1.bf16.msra.mxu0 0
    %1853 = vmatprep.subr.bf16.mxu0 0
    %1854 = vmatpush1.bf16.msra.mxu0 0
    %1855 = vmatprep.subr.bf16.mxu0 0
    %1856 = vmatpush1.bf16.msra.mxu0 0
    %1857 = vmatprep.subr.bf16.mxu0 0
    %1858 = vmatpush1.bf16.msra.mxu0 0
    %1859 = vmatprep.subr.bf16.mxu0 0
    %1860 = vmatpush1.bf16.msra.mxu0 0
    %1861 = vmatprep.subr.bf16.mxu0 0
    %1862 = vmatpush1.bf16.msra.mxu0 0
    %1863 = vmatprep.subr.bf16.mxu0 0
    %1864 = vmatpush1.bf16.msra.mxu0 0
    %1865 = vmatprep.subr.bf16.mxu0 0
    %1866 = vmatpush1.bf16.msra.mxu0 0
    %1867 = vmatprep.mubr.bf16.mxu0 0
    %1868 = vmatmul.mubr.bf16.gmra.mrb[0].mxu0 %v1763
    %v1869 = vpop.f32.mrb[0].mxu0
    %v1870 = vadd.f32 %v1785, %v1869
    %v1871 = vpop.f32.mrb[0].mxu0
    %v1872 = vpop.f32.mrb[0].mxu0
    %v1873 = vpop.f32.mrb[0].mxu0
    %1874 = vdwg.mxu0
    %1875 = vst [vmem:[#allocation16] sm:$0xff] %v1870
    // Predicated region
    $region86: #{medium_classifier.1} parent=1 // pred_check
      _
    $region87: #{medium_classifier.1} parent=1 // pred_check_branch
      %1877 = sbr.rel (0) target = $region89
    $region88: #{medium_classifier.1} parent=1 // pred_region
      %s1879 = ssub.s32 128, 128
      %1880 = vsyncadd [#allocation4], %s1879
      %s1882 = sshll.u32 [#allocation16], 4
      %s1883 = int_to_ptr.vmem [resolvable:$true] %s1882
      %1885 = dma.vmem_to_hbm [thread:$0]  %s1883, 128, %s13, [#allocation4]
    $region89: #{medium_classifier.1} parent=1 // pred_fallthru
      _
    // Predicated region
    $region90: #{medium_classifier.1} parent=1 // pred_check
      _
    $region91: #{medium_classifier.1} parent=1 // pred_check_branch
      %1887 = sbr.rel (0) target = $region93
    $region92: #{medium_classifier.1} parent=1 // pred_region
      %1888 = dma.done [#allocation4], 128
    $region93: #{medium_classifier.1} parent=1 // pred_fallthru
      _
    %1889 = vsyncpa [#allocation3], 1
    %1890 = vsyncpa [#allocation6], 1
    %1891 = vsyncpa [#allocation9], 1
    %1892 = vsyncpa [#allocation12], 1
    %1893 = vsyncpa [#allocation15], 1
    %1894 = vsyncpa [#allocation4], 1

</llo_original>
